<compile_context>
chip_gen: v7x
topology: tpu7x:2x2x1
jax: 0.10.0
libtpu: 0.0.40
codegen_flags: <defaults>
</compile_context>

<pallas_src>
import functools

import jax
import jax.numpy as jnp
import numpy as np
from jax import lax
from jax.experimental import pallas as pl
from jax.experimental.pallas import tpu as pltpu


def _gkt_kernel(
    x_emb_ref, qoh_ref, init_h_ref,                 # per-step inputs + init
    w1_h_ref, w1_x_ref, w2_ref, b_mlp_ref,          # mlp_self (split weights)
    w_ih_m_ref, w_ih_h_ref, w_hh_ref, b_gru_ref,    # GRU (split input weights)
    out_w_ref, out_b_ref,                           # out_layer + bias
    y_ref, h_ref,                                   # flat batch-first outputs
    ht_scr,                                         # (B, NQ, H) running state
    *, num_q, hidden, batch, seq,
):
    H, NQ, B = hidden, num_q, batch

    # ---- init: running state + h[:, 0] = init_h ------------------------------
    init_h = init_h_ref[...]                                     # (NQ, H)
    ht_scr[...] = jnp.broadcast_to(init_h[None], (B, NQ, H))
    for b in range(B):
        h_ref[pl.ds(b * (seq + 1), 1)] = init_h[None]            # static index

    # ---- hoist parameters (loaded once, reused for every timestep) ----------
    w1_h, w1_x, w2 = w1_h_ref[...], w1_x_ref[...], w2_ref[...]
    b1, b2 = b_mlp_ref[0:1, :], b_mlp_ref[1:2, :]
    w_ih_m, w_ih_h = w_ih_m_ref[...], w_ih_h_ref[...]
    w_hh = w_hh_ref[...]
    b_ih, b_hh = b_gru_ref[0:1, :], b_gru_ref[1:2, :]
    out_w = out_w_ref[...]                                       # (1, H)
    out_b = out_b_ref[...]                                       # (1, NQ)

    def step(t, carry):
        ht = ht_scr[...]                                         # (B, NQ, H)
        xt = x_emb_ref[t]                                        # (B, H)
        qoh = qoh_ref[t]                                         # (B, NQ)

        # gather the single active NQ row per batch element via the one-hot
        ht_sel = jnp.sum(qoh[:, :, None] * ht, axis=1)           # (B, H)

        # f_self: Linear(2H,H) -> ReLU -> (Dropout=identity) -> Linear(H,H),
        # evaluated only on the active rows; split-weight form (no concat).
        hdn = jnp.maximum(
            jnp.dot(ht_sel, w1_h, preferred_element_type=jnp.float32)
            + jnp.dot(xt, w1_x, preferred_element_type=jnp.float32) + b1, 0.0)
        f_row = (jnp.dot(hdn, w2, preferred_element_type=jnp.float32)
                 + b2)                                           # (B, H)

        # TODO(synk): f_neighbor is abstract (`pass` -> None) in the reference
        # module, so its (1 - onehot)-weighted contribution is taken as zero.

        # input-to-hidden GRU preactivations for all NQ rows at once.
        # gin = cat([m, ht]) with m = onehot * f_row  =>
        #   gi = ht @ w_ih_h + onehot (x) (f_row @ w_ih_m) + b_ih
        gi_m = jnp.dot(f_row, w_ih_m,
                       preferred_element_type=jnp.float32)       # (B, 3H)
        gi_h = jnp.dot(ht.reshape(B * NQ, H), w_ih_h,
                       preferred_element_type=jnp.float32
                       ).reshape(B, NQ, 3 * H)
        gi = gi_h + qoh[:, :, None] * gi_m[:, None, :] + b_ih    # (B, NQ, 3H)

        # serial GRU recurrence over the NQ axis (h0 = 0 each timestep);
        # only the hidden-to-hidden matmul stays on the critical path.
        h_prev = jnp.zeros((B, H), jnp.float32)
        for i in range(NQ):                                      # NQ small
            gh = jnp.dot(h_prev, w_hh,
                         preferred_element_type=jnp.float32) + b_hh
            gi_i = gi[:, i, :]
            r_g = jax.nn.sigmoid(gi_i[:, :H] + gh[:, :H])
            z_g = jax.nn.sigmoid(gi_i[:, H:2 * H] + gh[:, H:2 * H])
            n_g = jnp.tanh(gi_i[:, 2 * H:] + r_g * gh[:, 2 * H:])
            h_prev = (1.0 - z_g) * n_g + z_g * h_prev
            ht_scr[:, i:i + 1, :] = h_prev[:, None, :]           # in-place row

        new_ht = ht_scr[...]                                     # (B, NQ, H)

        # predict: sigmoid(Linear(H,1,no bias)(ht) + bias)
        logits = jnp.sum(new_ht * out_w[None], axis=-1) + out_b
        yt = jax.nn.sigmoid(logits)                              # (B, NQ)

        # batch-first writeback via flattened leading dim (leading-axis
        # dynamic stores only; wrapper reshape is a free leading-dim split).
        for b in range(B):
            h_ref[pl.ds(b * (seq + 1) + t + 1, 1)] = new_ht[b:b + 1]
            y_ref[pl.ds(b * seq + t, 1)] = yt[b:b + 1]
        return carry

    lax.fori_loop(0, seq, step, 0)


def gkt_forward(params, q, r):
    B, n = q.shape
    NQ, H = params["num_q"], params["hidden"]

    # time-major per-step inputs, built directly (no post-hoc transpose copy)
    x_t = (q + NQ * r).T                                         # (n, B)
    x_emb_t = params["x_emb"][x_t]                               # (n, B, H)
    qoh_t = jax.nn.one_hot(q.T, NQ, dtype=jnp.float32)           # (n, B, NQ)

    # split weights once so the kernel never concatenates along the 2H axis
    w1_h, w1_x = params["w1"][:H], params["w1"][H:]              # (H,H) each
    w_ih_m, w_ih_h = params["w_ih"][:H], params["w_ih"][H:]      # (H,3H) each
    b_mlp = jnp.concatenate([params["b1"], params["b2"]], axis=0)      # (2, H)
    b_gru = jnp.concatenate([params["b_ih"], params["b_hh"]], axis=0)  # (2, 3H)

    kernel = functools.partial(_gkt_kernel, num_q=NQ, hidden=H,
                               batch=B, seq=n)

    # Single invocation: every operand is a whole-array VMEM block (all tiny),
    # so parameters are DMA'd exactly once and outputs are written back as one
    # large slab instead of n sub-128-lane per-step stores.
    y_flat, h_flat = pl.pallas_call(
        kernel,
        out_shape=(
            jax.ShapeDtypeStruct((B * n, NQ), jnp.float32),
            jax.ShapeDtypeStruct((B * (n + 1), NQ, H), jnp.float32),
        ),
        scratch_shapes=[pltpu.VMEM((B, NQ, H), jnp.float32)],
    )(x_emb_t, qoh_t, params["init_h"],
      w1_h, w1_x, params["w2"], b_mlp,
      w_ih_m, w_ih_h, params["w_hh"], b_gru,
      params["out_w"], params["out_b"])

    # free leading-dim splits (no transpose / concat HBM traffic)
    y = y_flat.reshape(B, n, NQ)
    h = h_flat.reshape(B, n + 1, NQ, H)
    return y, h


def gkt_reference(params, q, r):
    """Pure-JAX reference mirroring the PyTorch forward (f_neighbor -> 0)."""
    B, n = q.shape
    NQ, H = params["num_q"], params["hidden"]
    x = q + NQ * r
    x_emb = params["x_emb"][x]
    qoh = jax.nn.one_hot(q, NQ, dtype=jnp.float32)
    ht = jnp.broadcast_to(params["init_h"][None], (B, NQ, H))
    hs, ys = [ht], []
    for t in range(n):
        xt = x_emb[:, t]
        qo = qoh[:, t][:, :, None]
        tail = qo * jnp.broadcast_to(xt[:, None, :], (B, NQ, H)) \
            + (1.0 - qo) * params["q_emb"][None]
        ht_ = jnp.concatenate([ht, tail], -1)
        flat = ht_.reshape(B * NQ, 2 * H)
        hdn = jnp.maximum(flat @ params["w1"] + params["b1"], 0.0)
        f = (hdn @ params["w2"] + params["b2"]).reshape(B, NQ, H)
        m = qo * f
        gin = jnp.concatenate([m, ht], -1)
        h_prev = jnp.zeros((B, H), jnp.float32)
        rows = []
        for i in range(NQ):
            gi = gin[:, i] @ params["w_ih"] + params["b_ih"]
            gh = h_prev @ params["w_hh"] + params["b_hh"]
            rg = jax.nn.sigmoid(gi[:, :H] + gh[:, :H])
            zg = jax.nn.sigmoid(gi[:, H:2 * H] + gh[:, H:2 * H])
            ng = jnp.tanh(gi[:, 2 * H:] + rg * gh[:, 2 * H:])
            h_prev = (1.0 - zg) * ng + zg * h_prev
            rows.append(h_prev)
        ht = jnp.stack(rows, 1)
        yt = jax.nn.sigmoid(jnp.sum(ht * params["out_w"], -1) + params["out_b"])
        hs.append(ht)
        ys.append(yt)
    return jnp.stack(ys, 1), jnp.stack(hs, 1)


def init_params(key, num_q, hidden):
    """Deterministic synthetic parameters (shapes match GKT.__init__)."""
    H = hidden
    ks = jax.random.split(key, 12)
    u = lambda k, shape, bound: jax.random.uniform(
        k, shape, jnp.float32, -bound, bound)
    return {
        "num_q": num_q,
        "hidden": H,
        # Embedding(num_q*2, H) ~ N(0,1)
        "x_emb": jax.random.normal(ks[0], (num_q * 2, H), jnp.float32),
        # q_emb: kaiming_normal_ -> std = sqrt(2 / fan_in), fan_in = H
        "q_emb": jax.random.normal(ks[1], (num_q, H), jnp.float32)
        * jnp.sqrt(2.0 / H),
        # init_h: uninitialized in torch; deterministic normal here
        "init_h": 0.1 * jax.random.normal(ks[2], (num_q, H), jnp.float32),
        # mlp_self: Linear(2H, H) then Linear(H, H) (weights stored transposed)
        "w1": u(ks[3], (2 * H, H), 1.0 / np.sqrt(2 * H)),
        "b1": u(ks[4], (1, H), 1.0 / np.sqrt(2 * H)),
        "w2": u(ks[5], (H, H), 1.0 / np.sqrt(H)),
        "b2": u(ks[6], (1, H), 1.0 / np.sqrt(H)),
        # GRU(2H -> H), gate order (r, z, n); weights stored transposed
        "w_ih": u(ks[7], (2 * H, 3 * H), 1.0 / np.sqrt(H)),
        "w_hh": u(ks[8], (H, 3 * H), 1.0 / np.sqrt(H)),
        "b_ih": u(ks[9], (1, 3 * H), 1.0 / np.sqrt(H)),
        "b_hh": u(ks[10], (1, 3 * H), 1.0 / np.sqrt(H)),
        # out_layer: Linear(H, 1, bias=False); bias: Parameter(1, num_q, 1)
        "out_w": u(ks[11], (1, H), 1.0 / np.sqrt(H)),
        "out_b": 0.1 * jnp.ones((1, num_q), jnp.float32),
    }


if __name__ == "__main__":
    NUM_Q, HIDDEN, BATCH, SEQ = 8, 32, 2, 8

    key = jax.random.PRNGKey(0)
    kp, kq, kr = jax.random.split(key, 3)
    params = init_params(kp, NUM_Q, HIDDEN)
    q = jax.random.randint(kq, (BATCH, SEQ), 0, NUM_Q, dtype=jnp.int32)
    r = jax.random.randint(kr, (BATCH, SEQ), 0, 2, dtype=jnp.int32)

    y, h = jax.block_until_ready(gkt_forward(params, q, r))
    y_ref, h_ref = jax.block_until_ready(gkt_reference(params, q, r))

    assert y.shape == (BATCH, SEQ, NUM_Q), y.shape
    assert h.shape == (BATCH, SEQ + 1, NUM_Q, HIDDEN), h.shape
    np.testing.assert_allclose(np.asarray(y), np.asarray(y_ref),
                               rtol=2e-3, atol=2e-3)
    np.testing.assert_allclose(np.asarray(h), np.asarray(h_ref),
                               rtol=2e-3, atol=2e-3)
    print("KERNEL_OK")
</pallas_src>

<mosaic_0001>
module attributes {stable_mosaic.version = 11 : i64} {
  func.func @_gkt_kernel(%arg0: memref<8x2x32xf32, #tpu.memory_space<vmem>>, %arg1: memref<8x2x8xf32, #tpu.memory_space<vmem>>, %arg2: memref<8x32xf32, #tpu.memory_space<vmem>>, %arg3: memref<32x32xf32, #tpu.memory_space<vmem>>, %arg4: memref<32x32xf32, #tpu.memory_space<vmem>>, %arg5: memref<32x32xf32, #tpu.memory_space<vmem>>, %arg6: memref<2x32xf32, #tpu.memory_space<vmem>>, %arg7: memref<32x96xf32, #tpu.memory_space<vmem>>, %arg8: memref<32x96xf32, #tpu.memory_space<vmem>>, %arg9: memref<32x96xf32, #tpu.memory_space<vmem>>, %arg10: memref<2x96xf32, #tpu.memory_space<vmem>>, %arg11: memref<1x32xf32, #tpu.memory_space<vmem>>, %arg12: memref<1x8xf32, #tpu.memory_space<vmem>>, %arg13: memref<16x8xf32, #tpu.memory_space<vmem>>, %arg14: memref<18x8x32xf32, #tpu.memory_space<vmem>>, %arg15: memref<2x8x32xf32, #tpu.memory_space<vmem>>) attributes {dimension_semantics = [], scalar_prefetch = 0 : i64, scratch_operands = 1 : i64, tpu.core_type = #tpu.core_type<tc>} {
    %c0 = arith.constant 0 : index
    %c0_0 = arith.constant 0 : index
    %0 = vector.load %arg2[%c0, %c0_0] : memref<8x32xf32, #tpu.memory_space<vmem>>, vector<8x32xf32>
    %1 = vector.shape_cast %0 : vector<8x32xf32> to vector<1x8x32xf32>
    %2 = vector.shape_cast %1 : vector<1x8x32xf32> to vector<1x8x32xf32>
    %3 = vector.broadcast %2 : vector<1x8x32xf32> to vector<2x8x32xf32>
    %c0_1 = arith.constant 0 : index
    %c0_2 = arith.constant 0 : index
    %c0_3 = arith.constant 0 : index
    %4 = vector.load %arg15[%c0_1, %c0_2, %c0_3] : memref<2x8x32xf32, #tpu.memory_space<vmem>>, vector<2x8x32xf32>
    tpu.vector_store %arg15[%c0_1, %c0_2, %c0_3], %3 {strides = array<i32>} : memref<2x8x32xf32, #tpu.memory_space<vmem>>, vector<2x8x32xf32>,
    %5 = vector.shape_cast %0 : vector<8x32xf32> to vector<1x8x32xf32>
    %c0_4 = arith.constant 0 : index
    %c0_5 = arith.constant 0 : index
    %c0_6 = arith.constant 0 : index
    %6 = vector.load %arg14[%c0_4, %c0_5, %c0_6] : memref<18x8x32xf32, #tpu.memory_space<vmem>>, vector<1x8x32xf32>
    tpu.vector_store %arg14[%c0_4, %c0_5, %c0_6], %5 {strides = array<i32>} : memref<18x8x32xf32, #tpu.memory_space<vmem>>, vector<1x8x32xf32>,
    %7 = vector.shape_cast %0 : vector<8x32xf32> to vector<1x8x32xf32>
    %c9 = arith.constant 9 : index
    %c0_7 = arith.constant 0 : index
    %c0_8 = arith.constant 0 : index
    %8 = vector.load %arg14[%c9, %c0_7, %c0_8] : memref<18x8x32xf32, #tpu.memory_space<vmem>>, vector<1x8x32xf32>
    tpu.vector_store %arg14[%c9, %c0_7, %c0_8], %7 {strides = array<i32>} : memref<18x8x32xf32, #tpu.memory_space<vmem>>, vector<1x8x32xf32>,
    %c0_9 = arith.constant 0 : index
    %c0_10 = arith.constant 0 : index
    %9 = vector.load %arg3[%c0_9, %c0_10] : memref<32x32xf32, #tpu.memory_space<vmem>>, vector<32x32xf32>
    %c0_11 = arith.constant 0 : index
    %c0_12 = arith.constant 0 : index
    %10 = vector.load %arg4[%c0_11, %c0_12] : memref<32x32xf32, #tpu.memory_space<vmem>>, vector<32x32xf32>
    %c0_13 = arith.constant 0 : index
    %c0_14 = arith.constant 0 : index
    %11 = vector.load %arg5[%c0_13, %c0_14] : memref<32x32xf32, #tpu.memory_space<vmem>>, vector<32x32xf32>
    %c0_15 = arith.constant 0 : index
    %c0_16 = arith.constant 0 : index
    %12 = vector.load %arg6[%c0_15, %c0_16] : memref<2x32xf32, #tpu.memory_space<vmem>>, vector<1x32xf32>
    %c1 = arith.constant 1 : index
    %c0_17 = arith.constant 0 : index
    %13 = vector.load %arg6[%c1, %c0_17] : memref<2x32xf32, #tpu.memory_space<vmem>>, vector<1x32xf32>
    %c0_18 = arith.constant 0 : index
    %c0_19 = arith.constant 0 : index
    %14 = vector.load %arg7[%c0_18, %c0_19] : memref<32x96xf32, #tpu.memory_space<vmem>>, vector<32x96xf32>
    %c0_20 = arith.constant 0 : index
    %c0_21 = arith.constant 0 : index
    %15 = vector.load %arg8[%c0_20, %c0_21] : memref<32x96xf32, #tpu.memory_space<vmem>>, vector<32x96xf32>
    %c0_22 = arith.constant 0 : index
    %c0_23 = arith.constant 0 : index
    %16 = vector.load %arg9[%c0_22, %c0_23] : memref<32x96xf32, #tpu.memory_space<vmem>>, vector<32x96xf32>
    %c0_24 = arith.constant 0 : index
    %c0_25 = arith.constant 0 : index
    %17 = vector.load %arg10[%c0_24, %c0_25] : memref<2x96xf32, #tpu.memory_space<vmem>>, vector<1x96xf32>
    %c1_26 = arith.constant 1 : index
    %c0_27 = arith.constant 0 : index
    %18 = vector.load %arg10[%c1_26, %c0_27] : memref<2x96xf32, #tpu.memory_space<vmem>>, vector<1x96xf32>
    %c0_28 = arith.constant 0 : index
    %c0_29 = arith.constant 0 : index
    %19 = vector.load %arg11[%c0_28, %c0_29] : memref<1x32xf32, #tpu.memory_space<vmem>>, vector<1x32xf32>
    %c0_30 = arith.constant 0 : index
    %c0_31 = arith.constant 0 : index
    %20 = vector.load %arg12[%c0_30, %c0_31] : memref<1x8xf32, #tpu.memory_space<vmem>>, vector<1x8xf32>
    %c0_i32 = arith.constant 0 : i32
    %c8_i32 = arith.constant 8 : i32
    %21 = arith.addi %c0_i32, %c8_i32 : i32
    %c1_i32 = arith.constant 1 : i32
    scf.for %arg16 = %c0_i32 to %21 step %c1_i32  : i32 {
      %c0_33 = arith.constant 0 : index
      %c0_34 = arith.constant 0 : index
      %c0_35 = arith.constant 0 : index
      %22 = vector.load %arg15[%c0_33, %c0_34, %c0_35] : memref<2x8x32xf32, #tpu.memory_space<vmem>>, vector<2x8x32xf32>
      %23 = arith.index_cast %arg16 : i32 to index
      %c0_36 = arith.constant 0 : index
      %c0_37 = arith.constant 0 : index
      %24 = vector.load %arg0[%23, %c0_36, %c0_37] : memref<8x2x32xf32, #tpu.memory_space<vmem>>, vector<1x2x32xf32>
      %25 = vector.shape_cast %24 : vector<1x2x32xf32> to vector<2x32xf32>
      %26 = arith.index_cast %arg16 : i32 to index
      %c0_38 = arith.constant 0 : index
      %c0_39 = arith.constant 0 : index
      %27 = vector.load %arg1[%26, %c0_38, %c0_39] : memref<8x2x8xf32, #tpu.memory_space<vmem>>, vector<1x2x8xf32>
      %28 = vector.shape_cast %27 : vector<1x2x8xf32> to vector<2x8xf32>
      %29 = vector.shape_cast %28 : vector<2x8xf32> to vector<2x8x1xf32>
      %30 = vector.broadcast %29 : vector<2x8x1xf32> to vector<2x8x32xf32>
      %31 = arith.mulf %30, %22 : vector<2x8x32xf32>
      %cst = arith.constant dense<0.000000e+00> : vector<2x32xf32>
      %32 = vector.multi_reduction <add>, %31, %cst [1] : vector<2x8x32xf32> to vector<2x32xf32>
      %cst_40 = arith.constant dense<0.000000e+00> : vector<2x32xf32>
      %33 = tpu.matmul %32, %9, %cst_40 {dimension_numbers = #tpu.dot_dimension_numbers<[1], [0], [0], [1], [0, 0, 1, 1], [], []>} : vector<2x32xf32>, vector<32x32xf32>, vector<2x32xf32> -> vector<2x32xf32>
      %cst_41 = arith.constant dense<0.000000e+00> : vector<2x32xf32>
      %34 = tpu.matmul %25, %10, %cst_41 {dimension_numbers = #tpu.dot_dimension_numbers<[1], [0], [0], [1], [0, 0, 1, 1], [], []>} : vector<2x32xf32>, vector<32x32xf32>, vector<2x32xf32> -> vector<2x32xf32>
      %35 = arith.addf %33, %34 : vector<2x32xf32>
      %36 = vector.broadcast %12 : vector<1x32xf32> to vector<2x32xf32>
      %37 = arith.addf %35, %36 : vector<2x32xf32>
      %cst_42 = arith.constant 0.000000e+00 : f32
      %38 = vector.broadcast %cst_42 : f32 to vector<2x32xf32>
      %39 = arith.maximumf %37, %38 : vector<2x32xf32>
      %cst_43 = arith.constant dense<0.000000e+00> : vector<2x32xf32>
      %40 = tpu.matmul %39, %11, %cst_43 {dimension_numbers = #tpu.dot_dimension_numbers<[1], [0], [0], [1], [0, 0, 1, 1], [], []>} : vector<2x32xf32>, vector<32x32xf32>, vector<2x32xf32> -> vector<2x32xf32>
      %41 = vector.broadcast %13 : vector<1x32xf32> to vector<2x32xf32>
      %42 = arith.addf %40, %41 : vector<2x32xf32>
      %cst_44 = arith.constant dense<0.000000e+00> : vector<2x96xf32>
      %43 = tpu.matmul %42, %14, %cst_44 {dimension_numbers = #tpu.dot_dimension_numbers<[1], [0], [0], [1], [0, 0, 1, 1], [], []>} : vector<2x32xf32>, vector<32x96xf32>, vector<2x96xf32> -> vector<2x96xf32>
      %44 = vector.shape_cast %22 : vector<2x8x32xf32> to vector<16x32xf32>
      %cst_45 = arith.constant dense<0.000000e+00> : vector<16x96xf32>
      %45 = tpu.matmul %44, %15, %cst_45 {dimension_numbers = #tpu.dot_dimension_numbers<[1], [0], [0], [1], [0, 0, 1, 1], [], []>} : vector<16x32xf32>, vector<32x96xf32>, vector<16x96xf32> -> vector<16x96xf32>
      %46 = vector.shape_cast %45 : vector<16x96xf32> to vector<2x8x96xf32>
      %47 = vector.shape_cast %28 : vector<2x8xf32> to vector<2x8x1xf32>
      %48 = vector.shape_cast %43 : vector<2x96xf32> to vector<2x1x96xf32>
      %49 = vector.broadcast %47 : vector<2x8x1xf32> to vector<2x8x96xf32>
      %50 = vector.broadcast %48 : vector<2x1x96xf32> to vector<2x8x96xf32>
      %51 = arith.mulf %49, %50 : vector<2x8x96xf32>
      %52 = arith.addf %46, %51 : vector<2x8x96xf32>
      %53 = vector.shape_cast %17 : vector<1x96xf32> to vector<1x1x96xf32>
      %54 = vector.broadcast %53 : vector<1x1x96xf32> to vector<2x8x96xf32>
      %55 = arith.addf %52, %54 : vector<2x8x96xf32>
      %cst_46 = arith.constant 0.000000e+00 : f32
      %56 = vector.broadcast %cst_46 : f32 to vector<2x32xf32>
      %cst_47 = arith.constant dense<0.000000e+00> : vector<2x96xf32>
      %57 = tpu.matmul %56, %16, %cst_47 {dimension_numbers = #tpu.dot_dimension_numbers<[1], [0], [0], [1], [0, 0, 1, 1], [], []>} : vector<2x32xf32>, vector<32x96xf32>, vector<2x96xf32> -> vector<2x96xf32>
      %58 = vector.broadcast %18 : vector<1x96xf32> to vector<2x96xf32>
      %59 = arith.addf %57, %58 : vector<2x96xf32>
      %60 = vector.extract_strided_slice %55 {offsets = [0, 0, 0], sizes = [2, 1, 96], strides = [1, 1, 1]} : vector<2x8x96xf32> to vector<2x1x96xf32>
      %61 = vector.shape_cast %60 : vector<2x1x96xf32> to vector<2x96xf32>
      %62 = vector.extract_strided_slice %61 {offsets = [0, 0], sizes = [2, 32], strides = [1, 1]} : vector<2x96xf32> to vector<2x32xf32>
      %63 = vector.extract_strided_slice %59 {offsets = [0, 0], sizes = [2, 32], strides = [1, 1]} : vector<2x96xf32> to vector<2x32xf32>
      %64 = arith.addf %62, %63 : vector<2x32xf32>
      %65 = arith.negf %64 : vector<2x32xf32>
      %66 = math.exp %65 : vector<2x32xf32>
      %cst_48 = arith.constant 1.000000e+00 : f32
      %67 = vector.broadcast %cst_48 : f32 to vector<2x32xf32>
      %68 = arith.addf %67, %66 : vector<2x32xf32>
      %69 = arith.divf %67, %68 : vector<2x32xf32>
      %70 = vector.extract_strided_slice %61 {offsets = [0, 32], sizes = [2, 32], strides = [1, 1]} : vector<2x96xf32> to vector<2x32xf32>
      %71 = vector.extract_strided_slice %59 {offsets = [0, 32], sizes = [2, 32], strides = [1, 1]} : vector<2x96xf32> to vector<2x32xf32>
      %72 = arith.addf %70, %71 : vector<2x32xf32>
      %73 = arith.negf %72 : vector<2x32xf32>
      %74 = math.exp %73 : vector<2x32xf32>
      %cst_49 = arith.constant 1.000000e+00 : f32
      %75 = vector.broadcast %cst_49 : f32 to vector<2x32xf32>
      %76 = arith.addf %75, %74 : vector<2x32xf32>
      %77 = arith.divf %75, %76 : vector<2x32xf32>
      %78 = vector.extract_strided_slice %61 {offsets = [0, 64], sizes = [2, 32], strides = [1, 1]} : vector<2x96xf32> to vector<2x32xf32>
      %79 = vector.extract_strided_slice %59 {offsets = [0, 64], sizes = [2, 32], strides = [1, 1]} : vector<2x96xf32> to vector<2x32xf32>
      %80 = arith.mulf %69, %79 : vector<2x32xf32>
      %81 = arith.addf %78, %80 : vector<2x32xf32>
      %82 = math.tanh %81 : vector<2x32xf32>
      %cst_50 = arith.constant 1.000000e+00 : f32
      %83 = vector.broadcast %cst_50 : f32 to vector<2x32xf32>
      %84 = arith.subf %83, %77 : vector<2x32xf32>
      %85 = arith.mulf %84, %82 : vector<2x32xf32>
      %86 = arith.mulf %77, %56 : vector<2x32xf32>
      %87 = arith.addf %85, %86 : vector<2x32xf32>
      %88 = vector.shape_cast %87 : vector<2x32xf32> to vector<2x1x32xf32>
      %c0_51 = arith.constant 0 : index
      %c0_52 = arith.constant 0 : index
      %c0_53 = arith.constant 0 : index
      %89 = vector.load %arg15[%c0_51, %c0_52, %c0_53] : memref<2x8x32xf32, #tpu.memory_space<vmem>>, vector<2x1x32xf32>
      tpu.vector_store %arg15[%c0_51, %c0_52, %c0_53], %88 {strides = array<i32>} : memref<2x8x32xf32, #tpu.memory_space<vmem>>, vector<2x1x32xf32>,
      %cst_54 = arith.constant dense<0.000000e+00> : vector<2x96xf32>
      %90 = tpu.matmul %87, %16, %cst_54 {dimension_numbers = #tpu.dot_dimension_numbers<[1], [0], [0], [1], [0, 0, 1, 1], [], []>} : vector<2x32xf32>, vector<32x96xf32>, vector<2x96xf32> -> vector<2x96xf32>
      %91 = vector.broadcast %18 : vector<1x96xf32> to vector<2x96xf32>
      %92 = arith.addf %90, %91 : vector<2x96xf32>
      %93 = vector.extract_strided_slice %55 {offsets = [0, 1, 0], sizes = [2, 1, 96], strides = [1, 1, 1]} : vector<2x8x96xf32> to vector<2x1x96xf32>
      %94 = vector.shape_cast %93 : vector<2x1x96xf32> to vector<2x96xf32>
      %95 = vector.extract_strided_slice %94 {offsets = [0, 0], sizes = [2, 32], strides = [1, 1]} : vector<2x96xf32> to vector<2x32xf32>
      %96 = vector.extract_strided_slice %92 {offsets = [0, 0], sizes = [2, 32], strides = [1, 1]} : vector<2x96xf32> to vector<2x32xf32>
      %97 = arith.addf %95, %96 : vector<2x32xf32>
      %98 = arith.negf %97 : vector<2x32xf32>
      %99 = math.exp %98 : vector<2x32xf32>
      %cst_55 = arith.constant 1.000000e+00 : f32
      %100 = vector.broadcast %cst_55 : f32 to vector<2x32xf32>
      %101 = arith.addf %100, %99 : vector<2x32xf32>
      %102 = arith.divf %100, %101 : vector<2x32xf32>
      %103 = vector.extract_strided_slice %94 {offsets = [0, 32], sizes = [2, 32], strides = [1, 1]} : vector<2x96xf32> to vector<2x32xf32>
      %104 = vector.extract_strided_slice %92 {offsets = [0, 32], sizes = [2, 32], strides = [1, 1]} : vector<2x96xf32> to vector<2x32xf32>
      %105 = arith.addf %103, %104 : vector<2x32xf32>
      %106 = arith.negf %105 : vector<2x32xf32>
      %107 = math.exp %106 : vector<2x32xf32>
      %cst_56 = arith.constant 1.000000e+00 : f32
      %108 = vector.broadcast %cst_56 : f32 to vector<2x32xf32>
      %109 = arith.addf %108, %107 : vector<2x32xf32>
      %110 = arith.divf %108, %109 : vector<2x32xf32>
      %111 = vector.extract_strided_slice %94 {offsets = [0, 64], sizes = [2, 32], strides = [1, 1]} : vector<2x96xf32> to vector<2x32xf32>
      %112 = vector.extract_strided_slice %92 {offsets = [0, 64], sizes = [2, 32], strides = [1, 1]} : vector<2x96xf32> to vector<2x32xf32>
      %113 = arith.mulf %102, %112 : vector<2x32xf32>
      %114 = arith.addf %111, %113 : vector<2x32xf32>
      %115 = math.tanh %114 : vector<2x32xf32>
      %cst_57 = arith.constant 1.000000e+00 : f32
      %116 = vector.broadcast %cst_57 : f32 to vector<2x32xf32>
      %117 = arith.subf %116, %110 : vector<2x32xf32>
      %118 = arith.mulf %117, %115 : vector<2x32xf32>
      %119 = arith.mulf %110, %87 : vector<2x32xf32>
      %120 = arith.addf %118, %119 : vector<2x32xf32>
      %121 = vector.shape_cast %120 : vector<2x32xf32> to vector<2x1x32xf32>
      %c0_58 = arith.constant 0 : index
      %c1_59 = arith.constant 1 : index
      %c0_60 = arith.constant 0 : index
      %122 = vector.load %arg15[%c0_58, %c1_59, %c0_60] : memref<2x8x32xf32, #tpu.memory_space<vmem>>, vector<2x1x32xf32>
      tpu.vector_store %arg15[%c0_58, %c1_59, %c0_60], %121 {strides = array<i32>} : memref<2x8x32xf32, #tpu.memory_space<vmem>>, vector<2x1x32xf32>,
      %cst_61 = arith.constant dense<0.000000e+00> : vector<2x96xf32>
      %123 = tpu.matmul %120, %16, %cst_61 {dimension_numbers = #tpu.dot_dimension_numbers<[1], [0], [0], [1], [0, 0, 1, 1], [], []>} : vector<2x32xf32>, vector<32x96xf32>, vector<2x96xf32> -> vector<2x96xf32>
      %124 = vector.broadcast %18 : vector<1x96xf32> to vector<2x96xf32>
      %125 = arith.addf %123, %124 : vector<2x96xf32>
      %126 = vector.extract_strided_slice %55 {offsets = [0, 2, 0], sizes = [2, 1, 96], strides = [1, 1, 1]} : vector<2x8x96xf32> to vector<2x1x96xf32>
      %127 = vector.shape_cast %126 : vector<2x1x96xf32> to vector<2x96xf32>
      %128 = vector.extract_strided_slice %127 {offsets = [0, 0], sizes = [2, 32], strides = [1, 1]} : vector<2x96xf32> to vector<2x32xf32>
      %129 = vector.extract_strided_slice %125 {offsets = [0, 0], sizes = [2, 32], strides = [1, 1]} : vector<2x96xf32> to vector<2x32xf32>
      %130 = arith.addf %128, %129 : vector<2x32xf32>
      %131 = arith.negf %130 : vector<2x32xf32>
      %132 = math.exp %131 : vector<2x32xf32>
      %cst_62 = arith.constant 1.000000e+00 : f32
      %133 = vector.broadcast %cst_62 : f32 to vector<2x32xf32>
      %134 = arith.addf %133, %132 : vector<2x32xf32>
      %135 = arith.divf %133, %134 : vector<2x32xf32>
      %136 = vector.extract_strided_slice %127 {offsets = [0, 32], sizes = [2, 32], strides = [1, 1]} : vector<2x96xf32> to vector<2x32xf32>
      %137 = vector.extract_strided_slice %125 {offsets = [0, 32], sizes = [2, 32], strides = [1, 1]} : vector<2x96xf32> to vector<2x32xf32>
      %138 = arith.addf %136, %137 : vector<2x32xf32>
      %139 = arith.negf %138 : vector<2x32xf32>
      %140 = math.exp %139 : vector<2x32xf32>
      %cst_63 = arith.constant 1.000000e+00 : f32
      %141 = vector.broadcast %cst_63 : f32 to vector<2x32xf32>
      %142 = arith.addf %141, %140 : vector<2x32xf32>
      %143 = arith.divf %141, %142 : vector<2x32xf32>
      %144 = vector.extract_strided_slice %127 {offsets = [0, 64], sizes = [2, 32], strides = [1, 1]} : vector<2x96xf32> to vector<2x32xf32>
      %145 = vector.extract_strided_slice %125 {offsets = [0, 64], sizes = [2, 32], strides = [1, 1]} : vector<2x96xf32> to vector<2x32xf32>
      %146 = arith.mulf %135, %145 : vector<2x32xf32>
      %147 = arith.addf %144, %146 : vector<2x32xf32>
      %148 = math.tanh %147 : vector<2x32xf32>
      %cst_64 = arith.constant 1.000000e+00 : f32
      %149 = vector.broadcast %cst_64 : f32 to vector<2x32xf32>
      %150 = arith.subf %149, %143 : vector<2x32xf32>
      %151 = arith.mulf %150, %148 : vector<2x32xf32>
      %152 = arith.mulf %143, %120 : vector<2x32xf32>
      %153 = arith.addf %151, %152 : vector<2x32xf32>
      %154 = vector.shape_cast %153 : vector<2x32xf32> to vector<2x1x32xf32>
      %c0_65 = arith.constant 0 : index
      %c2 = arith.constant 2 : index
      %c0_66 = arith.constant 0 : index
      %155 = vector.load %arg15[%c0_65, %c2, %c0_66] : memref<2x8x32xf32, #tpu.memory_space<vmem>>, vector<2x1x32xf32>
      tpu.vector_store %arg15[%c0_65, %c2, %c0_66], %154 {strides = array<i32>} : memref<2x8x32xf32, #tpu.memory_space<vmem>>, vector<2x1x32xf32>,
      %cst_67 = arith.constant dense<0.000000e+00> : vector<2x96xf32>
      %156 = tpu.matmul %153, %16, %cst_67 {dimension_numbers = #tpu.dot_dimension_numbers<[1], [0], [0], [1], [0, 0, 1, 1], [], []>} : vector<2x32xf32>, vector<32x96xf32>, vector<2x96xf32> -> vector<2x96xf32>
      %157 = vector.broadcast %18 : vector<1x96xf32> to vector<2x96xf32>
      %158 = arith.addf %156, %157 : vector<2x96xf32>
      %159 = vector.extract_strided_slice %55 {offsets = [0, 3, 0], sizes = [2, 1, 96], strides = [1, 1, 1]} : vector<2x8x96xf32> to vector<2x1x96xf32>
      %160 = vector.shape_cast %159 : vector<2x1x96xf32> to vector<2x96xf32>
      %161 = vector.extract_strided_slice %160 {offsets = [0, 0], sizes = [2, 32], strides = [1, 1]} : vector<2x96xf32> to vector<2x32xf32>
      %162 = vector.extract_strided_slice %158 {offsets = [0, 0], sizes = [2, 32], strides = [1, 1]} : vector<2x96xf32> to vector<2x32xf32>
      %163 = arith.addf %161, %162 : vector<2x32xf32>
      %164 = arith.negf %163 : vector<2x32xf32>
      %165 = math.exp %164 : vector<2x32xf32>
      %cst_68 = arith.constant 1.000000e+00 : f32
      %166 = vector.broadcast %cst_68 : f32 to vector<2x32xf32>
      %167 = arith.addf %166, %165 : vector<2x32xf32>
      %168 = arith.divf %166, %167 : vector<2x32xf32>
      %169 = vector.extract_strided_slice %160 {offsets = [0, 32], sizes = [2, 32], strides = [1, 1]} : vector<2x96xf32> to vector<2x32xf32>
      %170 = vector.extract_strided_slice %158 {offsets = [0, 32], sizes = [2, 32], strides = [1, 1]} : vector<2x96xf32> to vector<2x32xf32>
      %171 = arith.addf %169, %170 : vector<2x32xf32>
      %172 = arith.negf %171 : vector<2x32xf32>
      %173 = math.exp %172 : vector<2x32xf32>
      %cst_69 = arith.constant 1.000000e+00 : f32
      %174 = vector.broadcast %cst_69 : f32 to vector<2x32xf32>
      %175 = arith.addf %174, %173 : vector<2x32xf32>
      %176 = arith.divf %174, %175 : vector<2x32xf32>
      %177 = vector.extract_strided_slice %160 {offsets = [0, 64], sizes = [2, 32], strides = [1, 1]} : vector<2x96xf32> to vector<2x32xf32>
      %178 = vector.extract_strided_slice %158 {offsets = [0, 64], sizes = [2, 32], strides = [1, 1]} : vector<2x96xf32> to vector<2x32xf32>
      %179 = arith.mulf %168, %178 : vector<2x32xf32>
      %180 = arith.addf %177, %179 : vector<2x32xf32>
      %181 = math.tanh %180 : vector<2x32xf32>
      %cst_70 = arith.constant 1.000000e+00 : f32
      %182 = vector.broadcast %cst_70 : f32 to vector<2x32xf32>
      %183 = arith.subf %182, %176 : vector<2x32xf32>
      %184 = arith.mulf %183, %181 : vector<2x32xf32>
      %185 = arith.mulf %176, %153 : vector<2x32xf32>
      %186 = arith.addf %184, %185 : vector<2x32xf32>
      %187 = vector.shape_cast %186 : vector<2x32xf32> to vector<2x1x32xf32>
      %c0_71 = arith.constant 0 : index
      %c3 = arith.constant 3 : index
      %c0_72 = arith.constant 0 : index
      %188 = vector.load %arg15[%c0_71, %c3, %c0_72] : memref<2x8x32xf32, #tpu.memory_space<vmem>>, vector<2x1x32xf32>
      tpu.vector_store %arg15[%c0_71, %c3, %c0_72], %187 {strides = array<i32>} : memref<2x8x32xf32, #tpu.memory_space<vmem>>, vector<2x1x32xf32>,
      %cst_73 = arith.constant dense<0.000000e+00> : vector<2x96xf32>
      %189 = tpu.matmul %186, %16, %cst_73 {dimension_numbers = #tpu.dot_dimension_numbers<[1], [0], [0], [1], [0, 0, 1, 1], [], []>} : vector<2x32xf32>, vector<32x96xf32>, vector<2x96xf32> -> vector<2x96xf32>
      %190 = vector.broadcast %18 : vector<1x96xf32> to vector<2x96xf32>
      %191 = arith.addf %189, %190 : vector<2x96xf32>
      %192 = vector.extract_strided_slice %55 {offsets = [0, 4, 0], sizes = [2, 1, 96], strides = [1, 1, 1]} : vector<2x8x96xf32> to vector<2x1x96xf32>
      %193 = vector.shape_cast %192 : vector<2x1x96xf32> to vector<2x96xf32>
      %194 = vector.extract_strided_slice %193 {offsets = [0, 0], sizes = [2, 32], strides = [1, 1]} : vector<2x96xf32> to vector<2x32xf32>
      %195 = vector.extract_strided_slice %191 {offsets = [0, 0], sizes = [2, 32], strides = [1, 1]} : vector<2x96xf32> to vector<2x32xf32>
      %196 = arith.addf %194, %195 : vector<2x32xf32>
      %197 = arith.negf %196 : vector<2x32xf32>
      %198 = math.exp %197 : vector<2x32xf32>
      %cst_74 = arith.constant 1.000000e+00 : f32
      %199 = vector.broadcast %cst_74 : f32 to vector<2x32xf32>
      %200 = arith.addf %199, %198 : vector<2x32xf32>
      %201 = arith.divf %199, %200 : vector<2x32xf32>
      %202 = vector.extract_strided_slice %193 {offsets = [0, 32], sizes = [2, 32], strides = [1, 1]} : vector<2x96xf32> to vector<2x32xf32>
      %203 = vector.extract_strided_slice %191 {offsets = [0, 32], sizes = [2, 32], strides = [1, 1]} : vector<2x96xf32> to vector<2x32xf32>
      %204 = arith.addf %202, %203 : vector<2x32xf32>
      %205 = arith.negf %204 : vector<2x32xf32>
      %206 = math.exp %205 : vector<2x32xf32>
      %cst_75 = arith.constant 1.000000e+00 : f32
      %207 = vector.broadcast %cst_75 : f32 to vector<2x32xf32>
      %208 = arith.addf %207, %206 : vector<2x32xf32>
      %209 = arith.divf %207, %208 : vector<2x32xf32>
      %210 = vector.extract_strided_slice %193 {offsets = [0, 64], sizes = [2, 32], strides = [1, 1]} : vector<2x96xf32> to vector<2x32xf32>
      %211 = vector.extract_strided_slice %191 {offsets = [0, 64], sizes = [2, 32], strides = [1, 1]} : vector<2x96xf32> to vector<2x32xf32>
      %212 = arith.mulf %201, %211 : vector<2x32xf32>
      %213 = arith.addf %210, %212 : vector<2x32xf32>
      %214 = math.tanh %213 : vector<2x32xf32>
      %cst_76 = arith.constant 1.000000e+00 : f32
      %215 = vector.broadcast %cst_76 : f32 to vector<2x32xf32>
      %216 = arith.subf %215, %209 : vector<2x32xf32>
      %217 = arith.mulf %216, %214 : vector<2x32xf32>
      %218 = arith.mulf %209, %186 : vector<2x32xf32>
      %219 = arith.addf %217, %218 : vector<2x32xf32>
      %220 = vector.shape_cast %219 : vector<2x32xf32> to vector<2x1x32xf32>
      %c0_77 = arith.constant 0 : index
      %c4 = arith.constant 4 : index
      %c0_78 = arith.constant 0 : index
      %221 = vector.load %arg15[%c0_77, %c4, %c0_78] : memref<2x8x32xf32, #tpu.memory_space<vmem>>, vector<2x1x32xf32>
      tpu.vector_store %arg15[%c0_77, %c4, %c0_78], %220 {strides = array<i32>} : memref<2x8x32xf32, #tpu.memory_space<vmem>>, vector<2x1x32xf32>,
      %cst_79 = arith.constant dense<0.000000e+00> : vector<2x96xf32>
      %222 = tpu.matmul %219, %16, %cst_79 {dimension_numbers = #tpu.dot_dimension_numbers<[1], [0], [0], [1], [0, 0, 1, 1], [], []>} : vector<2x32xf32>, vector<32x96xf32>, vector<2x96xf32> -> vector<2x96xf32>
      %223 = vector.broadcast %18 : vector<1x96xf32> to vector<2x96xf32>
      %224 = arith.addf %222, %223 : vector<2x96xf32>
      %225 = vector.extract_strided_slice %55 {offsets = [0, 5, 0], sizes = [2, 1, 96], strides = [1, 1, 1]} : vector<2x8x96xf32> to vector<2x1x96xf32>
      %226 = vector.shape_cast %225 : vector<2x1x96xf32> to vector<2x96xf32>
      %227 = vector.extract_strided_slice %226 {offsets = [0, 0], sizes = [2, 32], strides = [1, 1]} : vector<2x96xf32> to vector<2x32xf32>
      %228 = vector.extract_strided_slice %224 {offsets = [0, 0], sizes = [2, 32], strides = [1, 1]} : vector<2x96xf32> to vector<2x32xf32>
      %229 = arith.addf %227, %228 : vector<2x32xf32>
      %230 = arith.negf %229 : vector<2x32xf32>
      %231 = math.exp %230 : vector<2x32xf32>
      %cst_80 = arith.constant 1.000000e+00 : f32
      %232 = vector.broadcast %cst_80 : f32 to vector<2x32xf32>
      %233 = arith.addf %232, %231 : vector<2x32xf32>
      %234 = arith.divf %232, %233 : vector<2x32xf32>
      %235 = vector.extract_strided_slice %226 {offsets = [0, 32], sizes = [2, 32], strides = [1, 1]} : vector<2x96xf32> to vector<2x32xf32>
      %236 = vector.extract_strided_slice %224 {offsets = [0, 32], sizes = [2, 32], strides = [1, 1]} : vector<2x96xf32> to vector<2x32xf32>
      %237 = arith.addf %235, %236 : vector<2x32xf32>
      %238 = arith.negf %237 : vector<2x32xf32>
      %239 = math.exp %238 : vector<2x32xf32>
      %cst_81 = arith.constant 1.000000e+00 : f32
      %240 = vector.broadcast %cst_81 : f32 to vector<2x32xf32>
      %241 = arith.addf %240, %239 : vector<2x32xf32>
      %242 = arith.divf %240, %241 : vector<2x32xf32>
      %243 = vector.extract_strided_slice %226 {offsets = [0, 64], sizes = [2, 32], strides = [1, 1]} : vector<2x96xf32> to vector<2x32xf32>
      %244 = vector.extract_strided_slice %224 {offsets = [0, 64], sizes = [2, 32], strides = [1, 1]} : vector<2x96xf32> to vector<2x32xf32>
      %245 = arith.mulf %234, %244 : vector<2x32xf32>
      %246 = arith.addf %243, %245 : vector<2x32xf32>
      %247 = math.tanh %246 : vector<2x32xf32>
      %cst_82 = arith.constant 1.000000e+00 : f32
      %248 = vector.broadcast %cst_82 : f32 to vector<2x32xf32>
      %249 = arith.subf %248, %242 : vector<2x32xf32>
      %250 = arith.mulf %249, %247 : vector<2x32xf32>
      %251 = arith.mulf %242, %219 : vector<2x32xf32>
      %252 = arith.addf %250, %251 : vector<2x32xf32>
      %253 = vector.shape_cast %252 : vector<2x32xf32> to vector<2x1x32xf32>
      %c0_83 = arith.constant 0 : index
      %c5 = arith.constant 5 : index
      %c0_84 = arith.constant 0 : index
      %254 = vector.load %arg15[%c0_83, %c5, %c0_84] : memref<2x8x32xf32, #tpu.memory_space<vmem>>, vector<2x1x32xf32>
      tpu.vector_store %arg15[%c0_83, %c5, %c0_84], %253 {strides = array<i32>} : memref<2x8x32xf32, #tpu.memory_space<vmem>>, vector<2x1x32xf32>,
      %cst_85 = arith.constant dense<0.000000e+00> : vector<2x96xf32>
      %255 = tpu.matmul %252, %16, %cst_85 {dimension_numbers = #tpu.dot_dimension_numbers<[1], [0], [0], [1], [0, 0, 1, 1], [], []>} : vector<2x32xf32>, vector<32x96xf32>, vector<2x96xf32> -> vector<2x96xf32>
      %256 = vector.broadcast %18 : vector<1x96xf32> to vector<2x96xf32>
      %257 = arith.addf %255, %256 : vector<2x96xf32>
      %258 = vector.extract_strided_slice %55 {offsets = [0, 6, 0], sizes = [2, 1, 96], strides = [1, 1, 1]} : vector<2x8x96xf32> to vector<2x1x96xf32>
      %259 = vector.shape_cast %258 : vector<2x1x96xf32> to vector<2x96xf32>
      %260 = vector.extract_strided_slice %259 {offsets = [0, 0], sizes = [2, 32], strides = [1, 1]} : vector<2x96xf32> to vector<2x32xf32>
      %261 = vector.extract_strided_slice %257 {offsets = [0, 0], sizes = [2, 32], strides = [1, 1]} : vector<2x96xf32> to vector<2x32xf32>
      %262 = arith.addf %260, %261 : vector<2x32xf32>
      %263 = arith.negf %262 : vector<2x32xf32>
      %264 = math.exp %263 : vector<2x32xf32>
      %cst_86 = arith.constant 1.000000e+00 : f32
      %265 = vector.broadcast %cst_86 : f32 to vector<2x32xf32>
      %266 = arith.addf %265, %264 : vector<2x32xf32>
      %267 = arith.divf %265, %266 : vector<2x32xf32>
      %268 = vector.extract_strided_slice %259 {offsets = [0, 32], sizes = [2, 32], strides = [1, 1]} : vector<2x96xf32> to vector<2x32xf32>
      %269 = vector.extract_strided_slice %257 {offsets = [0, 32], sizes = [2, 32], strides = [1, 1]} : vector<2x96xf32> to vector<2x32xf32>
      %270 = arith.addf %268, %269 : vector<2x32xf32>
      %271 = arith.negf %270 : vector<2x32xf32>
      %272 = math.exp %271 : vector<2x32xf32>
      %cst_87 = arith.constant 1.000000e+00 : f32
      %273 = vector.broadcast %cst_87 : f32 to vector<2x32xf32>
      %274 = arith.addf %273, %272 : vector<2x32xf32>
      %275 = arith.divf %273, %274 : vector<2x32xf32>
      %276 = vector.extract_strided_slice %259 {offsets = [0, 64], sizes = [2, 32], strides = [1, 1]} : vector<2x96xf32> to vector<2x32xf32>
      %277 = vector.extract_strided_slice %257 {offsets = [0, 64], sizes = [2, 32], strides = [1, 1]} : vector<2x96xf32> to vector<2x32xf32>
      %278 = arith.mulf %267, %277 : vector<2x32xf32>
      %279 = arith.addf %276, %278 : vector<2x32xf32>
      %280 = math.tanh %279 : vector<2x32xf32>
      %cst_88 = arith.constant 1.000000e+00 : f32
      %281 = vector.broadcast %cst_88 : f32 to vector<2x32xf32>
      %282 = arith.subf %281, %275 : vector<2x32xf32>
      %283 = arith.mulf %282, %280 : vector<2x32xf32>
      %284 = arith.mulf %275, %252 : vector<2x32xf32>
      %285 = arith.addf %283, %284 : vector<2x32xf32>
      %286 = vector.shape_cast %285 : vector<2x32xf32> to vector<2x1x32xf32>
      %c0_89 = arith.constant 0 : index
      %c6 = arith.constant 6 : index
      %c0_90 = arith.constant 0 : index
      %287 = vector.load %arg15[%c0_89, %c6, %c0_90] : memref<2x8x32xf32, #tpu.memory_space<vmem>>, vector<2x1x32xf32>
      tpu.vector_store %arg15[%c0_89, %c6, %c0_90], %286 {strides = array<i32>} : memref<2x8x32xf32, #tpu.memory_space<vmem>>, vector<2x1x32xf32>,
      %cst_91 = arith.constant dense<0.000000e+00> : vector<2x96xf32>
      %288 = tpu.matmul %285, %16, %cst_91 {dimension_numbers = #tpu.dot_dimension_numbers<[1], [0], [0], [1], [0, 0, 1, 1], [], []>} : vector<2x32xf32>, vector<32x96xf32>, vector<2x96xf32> -> vector<2x96xf32>
      %289 = vector.broadcast %18 : vector<1x96xf32> to vector<2x96xf32>
      %290 = arith.addf %288, %289 : vector<2x96xf32>
      %291 = vector.extract_strided_slice %55 {offsets = [0, 7, 0], sizes = [2, 1, 96], strides = [1, 1, 1]} : vector<2x8x96xf32> to vector<2x1x96xf32>
      %292 = vector.shape_cast %291 : vector<2x1x96xf32> to vector<2x96xf32>
      %293 = vector.extract_strided_slice %292 {offsets = [0, 0], sizes = [2, 32], strides = [1, 1]} : vector<2x96xf32> to vector<2x32xf32>
      %294 = vector.extract_strided_slice %290 {offsets = [0, 0], sizes = [2, 32], strides = [1, 1]} : vector<2x96xf32> to vector<2x32xf32>
      %295 = arith.addf %293, %294 : vector<2x32xf32>
      %296 = arith.negf %295 : vector<2x32xf32>
      %297 = math.exp %296 : vector<2x32xf32>
      %cst_92 = arith.constant 1.000000e+00 : f32
      %298 = vector.broadcast %cst_92 : f32 to vector<2x32xf32>
      %299 = arith.addf %298, %297 : vector<2x32xf32>
      %300 = arith.divf %298, %299 : vector<2x32xf32>
      %301 = vector.extract_strided_slice %292 {offsets = [0, 32], sizes = [2, 32], strides = [1, 1]} : vector<2x96xf32> to vector<2x32xf32>
      %302 = vector.extract_strided_slice %290 {offsets = [0, 32], sizes = [2, 32], strides = [1, 1]} : vector<2x96xf32> to vector<2x32xf32>
      %303 = arith.addf %301, %302 : vector<2x32xf32>
      %304 = arith.negf %303 : vector<2x32xf32>
      %305 = math.exp %304 : vector<2x32xf32>
      %cst_93 = arith.constant 1.000000e+00 : f32
      %306 = vector.broadcast %cst_93 : f32 to vector<2x32xf32>
      %307 = arith.addf %306, %305 : vector<2x32xf32>
      %308 = arith.divf %306, %307 : vector<2x32xf32>
      %309 = vector.extract_strided_slice %292 {offsets = [0, 64], sizes = [2, 32], strides = [1, 1]} : vector<2x96xf32> to vector<2x32xf32>
      %310 = vector.extract_strided_slice %290 {offsets = [0, 64], sizes = [2, 32], strides = [1, 1]} : vector<2x96xf32> to vector<2x32xf32>
      %311 = arith.mulf %300, %310 : vector<2x32xf32>
      %312 = arith.addf %309, %311 : vector<2x32xf32>
      %313 = math.tanh %312 : vector<2x32xf32>
      %cst_94 = arith.constant 1.000000e+00 : f32
      %314 = vector.broadcast %cst_94 : f32 to vector<2x32xf32>
      %315 = arith.subf %314, %308 : vector<2x32xf32>
      %316 = arith.mulf %315, %313 : vector<2x32xf32>
      %317 = arith.mulf %308, %285 : vector<2x32xf32>
      %318 = arith.addf %316, %317 : vector<2x32xf32>
      %319 = vector.shape_cast %318 : vector<2x32xf32> to vector<2x1x32xf32>
      %c0_95 = arith.constant 0 : index
      %c7 = arith.constant 7 : index
      %c0_96 = arith.constant 0 : index
      %320 = vector.load %arg15[%c0_95, %c7, %c0_96] : memref<2x8x32xf32, #tpu.memory_space<vmem>>, vector<2x1x32xf32>
      tpu.vector_store %arg15[%c0_95, %c7, %c0_96], %319 {strides = array<i32>} : memref<2x8x32xf32, #tpu.memory_space<vmem>>, vector<2x1x32xf32>,
      %c0_97 = arith.constant 0 : index
      %c0_98 = arith.constant 0 : index
      %c0_99 = arith.constant 0 : index
      %321 = vector.load %arg15[%c0_97, %c0_98, %c0_99] : memref<2x8x32xf32, #tpu.memory_space<vmem>>, vector<2x8x32xf32>
      %322 = vector.shape_cast %19 : vector<1x32xf32> to vector<1x1x32xf32>
      %323 = vector.broadcast %322 : vector<1x1x32xf32> to vector<2x8x32xf32>
      %324 = arith.mulf %321, %323 : vector<2x8x32xf32>
      %cst_100 = arith.constant dense<0.000000e+00> : vector<2x8xf32>
      %325 = vector.multi_reduction <add>, %324, %cst_100 [2] : vector<2x8x32xf32> to vector<2x8xf32>
      %326 = vector.broadcast %20 : vector<1x8xf32> to vector<2x8xf32>
      %327 = arith.addf %325, %326 : vector<2x8xf32>
      %328 = arith.negf %327 : vector<2x8xf32>
      %329 = math.exp %328 : vector<2x8xf32>
      %cst_101 = arith.constant 1.000000e+00 : f32
      %330 = vector.broadcast %cst_101 : f32 to vector<2x8xf32>
      %331 = arith.addf %330, %329 : vector<2x8xf32>
      %332 = arith.divf %330, %331 : vector<2x8xf32>
      %333 = vector.extract_strided_slice %321 {offsets = [0, 0, 0], sizes = [1, 8, 32], strides = [1, 1, 1]} : vector<2x8x32xf32> to vector<1x8x32xf32>
      %c0_i32_102 = arith.constant 0 : i32
      %334 = arith.addi %c0_i32_102, %arg16 : i32
      %c1_i32_103 = arith.constant 1 : i32
      %335 = arith.addi %334, %c1_i32_103 : i32
      %336 = arith.index_cast %335 : i32 to index
      %c0_104 = arith.constant 0 : index
      %c0_105 = arith.constant 0 : index
      %337 = vector.load %arg14[%336, %c0_104, %c0_105] : memref<18x8x32xf32, #tpu.memory_space<vmem>>, vector<1x8x32xf32>
      tpu.vector_store %arg14[%336, %c0_104, %c0_105], %333 {strides = array<i32>} : memref<18x8x32xf32, #tpu.memory_space<vmem>>, vector<1x8x32xf32>,
      %338 = vector.extract_strided_slice %332 {offsets = [0, 0], sizes = [1, 8], strides = [1, 1]} : vector<2x8xf32> to vector<1x8xf32>
      %c0_i32_106 = arith.constant 0 : i32
      %339 = arith.addi %c0_i32_106, %arg16 : i32
      %340 = arith.index_cast %339 : i32 to index
      %c0_107 = arith.constant 0 : index
      %341 = vector.load %arg13[%340, %c0_107] : memref<16x8xf32, #tpu.memory_space<vmem>>, vector<1x8xf32>
      tpu.vector_store %arg13[%340, %c0_107], %338 {strides = array<i32>} : memref<16x8xf32, #tpu.memory_space<vmem>>, vector<1x8xf32>,
      %342 = vector.extract_strided_slice %321 {offsets = [1, 0, 0], sizes = [1, 8, 32], strides = [1, 1, 1]} : vector<2x8x32xf32> to vector<1x8x32xf32>
      %c9_i32 = arith.constant 9 : i32
      %343 = arith.addi %c9_i32, %arg16 : i32
      %c1_i32_108 = arith.constant 1 : i32
      %344 = arith.addi %343, %c1_i32_108 : i32
      %345 = arith.index_cast %344 : i32 to index
      %c0_109 = arith.constant 0 : index
      %c0_110 = arith.constant 0 : index
      %346 = vector.load %arg14[%345, %c0_109, %c0_110] : memref<18x8x32xf32, #tpu.memory_space<vmem>>, vector<1x8x32xf32>
      tpu.vector_store %arg14[%345, %c0_109, %c0_110], %342 {strides = array<i32>} : memref<18x8x32xf32, #tpu.memory_space<vmem>>, vector<1x8x32xf32>,
      %347 = vector.extract_strided_slice %332 {offsets = [1, 0], sizes = [1, 8], strides = [1, 1]} : vector<2x8xf32> to vector<1x8xf32>
      %c8_i32_111 = arith.constant 8 : i32
      %348 = arith.addi %c8_i32_111, %arg16 : i32
      %349 = arith.index_cast %348 : i32 to index
      %c0_112 = arith.constant 0 : index
      %350 = vector.load %arg13[%349, %c0_112] : memref<16x8xf32, #tpu.memory_space<vmem>>, vector<1x8xf32>
      tpu.vector_store %arg13[%349, %c0_112], %347 {strides = array<i32>} : memref<16x8xf32, #tpu.memory_space<vmem>>, vector<1x8xf32>,
    }
    %c8_i32_32 = arith.constant 8 : i32
    return
  }
}

</mosaic_0001>

<llo_original>
// kernel: tpu_custom_call.1
$region0: #{tpu_custom_call.1}
  #allocation0 [shape = 'u32[]', space=smem, size = 0x4, offset = 0x4, fixed_abs, tag = 'smem constant byte address 0x4 - core index']
  #allocation1 [shape = 'u32[144,128]{1,0:T(1,128)}', space=vmem, size = 0x12000, scoped, tag = 'internal scratch']
  #allocation2 [shape = 'f32[2,8,32]{2,1,0:T(8,128)}', space=vmem, size = 0x2000, scoped, tag = 'scratch operand']
  %s0 = inlined_call_operand.hbm [shape: f32[8,2,32], index: 0, kind: input, shape index: {}]
  %s1 = inlined_call_operand.hbm [shape: f32[8,2,8], index: 1, kind: input, shape index: {}]
  %s2 = inlined_call_operand.hbm [shape: f32[8,32], index: 2, kind: input, shape index: {}]
  %s3 = inlined_call_operand.hbm [shape: f32[32,32], index: 3, kind: input, shape index: {}]
  %s4 = inlined_call_operand.hbm [shape: f32[32,32], index: 4, kind: input, shape index: {}]
  %s5 = inlined_call_operand.hbm [shape: f32[32,32], index: 5, kind: input, shape index: {}]
  %s6 = inlined_call_operand.vmem [shape: f32[2,32], index: 6, kind: input, shape index: {}]
  %s7 = inlined_call_operand.hbm [shape: f32[32,96], index: 7, kind: input, shape index: {}]
  %s8 = inlined_call_operand.hbm [shape: f32[32,96], index: 8, kind: input, shape index: {}]
  %s9 = inlined_call_operand.vmem [shape: f32[32,96], index: 9, kind: input, shape index: {}]
  %s10 = inlined_call_operand.vmem [shape: f32[2,96], index: 10, kind: input, shape index: {}]
  %s11 = inlined_call_operand.vmem [shape: f32[1,32], index: 11, kind: input, shape index: {}]
  %s12 = inlined_call_operand.vmem [shape: f32[1,8], index: 12, kind: input, shape index: {}]
  %s13 = inlined_call_operand.vmem [shape: f32[16,8], index: 13, kind: output, shape index: {0}]
  %s14 = inlined_call_operand.hbm [shape: f32[18,8,32], index: 14, kind: output, shape index: {1}]
  %15 = xla_tuple %s13, %s14
  %s16 = sld [smem:[#allocation0]]
  $region109: #{tpu_custom_call.1} parent=0
    _
  %s18 = ssub.s32 1, %s16
  %s19 = scalar_select 0, %s18, %s16
  $region1: #{tpu_custom_call.1} parent=0
    #allocation3 [shape = 'u8[8192]{0}', space=vmem, size = 0x2000, scoped, tag = 'input window, operand 0, single buffered']
    #allocation4 [shape = 's32[1]{0}', space=sflag, size = 0x4, scoped, tag = 'scoped memory for tpu_custom_call.1']
    #allocation5 [shape = 's32[1]{0}', space=sflag, size = 0x4, scoped, tag = 'scoped memory for tpu_custom_call.1']
    #allocation6 [shape = 'u8[8192]{0}', space=vmem, size = 0x2000, scoped, tag = 'input window, operand 1, single buffered']
    #allocation7 [shape = 's32[1]{0}', space=sflag, size = 0x4, scoped, tag = 'scoped memory for tpu_custom_call.1']
    #allocation8 [shape = 'u8[4096]{0}', space=vmem, size = 0x1000, scoped, tag = 'input window, operand 2, single buffered']
    #allocation9 [shape = 'u8[16384]{0}', space=vmem, size = 0x4000, scoped, tag = 'input window, operand 3, single buffered']
    #allocation10 [shape = 's32[1]{0}', space=sflag, size = 0x4, scoped, tag = 'scoped memory for tpu_custom_call.1']
    #allocation11 [shape = 'u8[16384]{0}', space=vmem, size = 0x4000, scoped, tag = 'input window, operand 4, single buffered']
    #allocation12 [shape = 'u8[16384]{0}', space=vmem, size = 0x4000, scoped, tag = 'input window, operand 5, single buffered']
    #allocation13 [shape = 's32[1]{0}', space=sflag, size = 0x4, scoped, tag = 'scoped memory for tpu_custom_call.1']
    #allocation14 [shape = 'u8[16384]{0}', space=vmem, size = 0x4000, scoped, tag = 'input window, operand 7, single buffered']
    #allocation15 [shape = 'u8[16384]{0}', space=vmem, size = 0x4000, scoped, tag = 'input window, operand 8, single buffered']
    #allocation16 [shape = 's32[1]{0}', space=sflag, size = 0x4, scoped, tag = 'scoped memory for tpu_custom_call.1']
    #allocation17 [shape = 'u8[73728]{0}', space=vmem, size = 0x12000, scoped, tag = 'output window, operand 1, single buffered']
    %20 = vsyncpa [#allocation4], 0
    %21 = vsyncpa [#allocation7], 0
    %22 = vsyncpa [#allocation10], 0
    %23 = vsyncpa [#allocation13], 0
    %24 = vsyncpa [#allocation16], 0
    %25 = vsyncpa [#allocation5], 0
    // Predicated region
    $region2: #{tpu_custom_call.1} parent=1 // pred_check
      _
    $region3: #{tpu_custom_call.1} parent=1 // pred_check_branch
      %27 = sbr.rel (0) target = $region5
    $region4: #{tpu_custom_call.1} parent=1 // pred_region
      %s29 = ssub.s32 256, 256
      %30 = vsyncadd [#allocation4], %s29
      %s31 = sshll.u32 [#allocation3], 4
      %s32 = int_to_ptr.vmem [resolvable:$true] %s31
      %37 = dma.hbm_to_vmem [thread:$0]  %s0, 256, %s32, [#allocation4], 32, 32, 2
    $region5: #{tpu_custom_call.1} parent=1 // pred_fallthru
      _
    // Predicated region
    $region6: #{tpu_custom_call.1} parent=1 // pred_check
      _
    $region7: #{tpu_custom_call.1} parent=1 // pred_check_branch
      %39 = sbr.rel (0) target = $region9
    $region8: #{tpu_custom_call.1} parent=1 // pred_region
      %s41 = ssub.s32 256, 256
      %42 = vsyncadd [#allocation7], %s41
      %s43 = sshll.u32 [#allocation6], 4
      %s44 = int_to_ptr.vmem [resolvable:$true] %s43
      %49 = dma.hbm_to_vmem [thread:$0]  %s1, 256, %s44, [#allocation7], 32, 32, 2
    $region9: #{tpu_custom_call.1} parent=1 // pred_fallthru
      _
    // Predicated region
    $region10: #{tpu_custom_call.1} parent=1 // pred_check
      _
    $region11: #{tpu_custom_call.1} parent=1 // pred_check_branch
      %51 = sbr.rel (0) target = $region13
    $region12: #{tpu_custom_call.1} parent=1 // pred_region
      %s53 = ssub.s32 128, 128
      %54 = vsyncadd [#allocation7], %s53
      %s56 = sshll.u32 [#allocation8], 4
      %s57 = int_to_ptr.vmem [resolvable:$true] %s56
      %59 = dma.hbm_to_vmem [thread:$0]  %s2, 128, %s57, [#allocation7]
    $region13: #{tpu_custom_call.1} parent=1 // pred_fallthru
      _
    // Predicated region
    $region14: #{tpu_custom_call.1} parent=1 // pred_check
      _
    $region15: #{tpu_custom_call.1} parent=1 // pred_check_branch
      %61 = sbr.rel (0) target = $region17
    $region16: #{tpu_custom_call.1} parent=1 // pred_region
      %s63 = ssub.s32 512, 512
      %64 = vsyncadd [#allocation10], %s63
      %s65 = sshll.u32 [#allocation9], 4
      %s66 = int_to_ptr.vmem [resolvable:$true] %s65
      %71 = dma.hbm_to_vmem [thread:$0]  %s3, 512, %s66, [#allocation10], 128, 128, 8
    $region17: #{tpu_custom_call.1} parent=1 // pred_fallthru
      _
    // Predicated region
    $region18: #{tpu_custom_call.1} parent=1 // pred_check
      _
    $region19: #{tpu_custom_call.1} parent=1 // pred_check_branch
      %73 = sbr.rel (0) target = $region21
    $region20: #{tpu_custom_call.1} parent=1 // pred_region
      %s75 = ssub.s32 512, 512
      %76 = vsyncadd [#allocation10], %s75
      %s77 = sshll.u32 [#allocation11], 4
      %s78 = int_to_ptr.vmem [resolvable:$true] %s77
      %83 = dma.hbm_to_vmem [thread:$0]  %s4, 512, %s78, [#allocation10], 128, 128, 8
    $region21: #{tpu_custom_call.1} parent=1 // pred_fallthru
      _
    // Predicated region
    $region22: #{tpu_custom_call.1} parent=1 // pred_check
      _
    $region23: #{tpu_custom_call.1} parent=1 // pred_check_branch
      %85 = sbr.rel (0) target = $region25
    $region24: #{tpu_custom_call.1} parent=1 // pred_region
      %s87 = ssub.s32 512, 512
      %88 = vsyncadd [#allocation13], %s87
      %s89 = sshll.u32 [#allocation12], 4
      %s90 = int_to_ptr.vmem [resolvable:$true] %s89
      %95 = dma.hbm_to_vmem [thread:$0]  %s5, 512, %s90, [#allocation13], 128, 128, 8
    $region25: #{tpu_custom_call.1} parent=1 // pred_fallthru
      _
    // Predicated region
    $region26: #{tpu_custom_call.1} parent=1 // pred_check
      _
    $region27: #{tpu_custom_call.1} parent=1 // pred_check_branch
      %97 = sbr.rel (0) target = $region29
    $region28: #{tpu_custom_call.1} parent=1 // pred_region
      _
    $region29: #{tpu_custom_call.1} parent=1 // pred_fallthru
      _
    // Predicated region
    $region30: #{tpu_custom_call.1} parent=1 // pred_check
      _
    $region31: #{tpu_custom_call.1} parent=1 // pred_check_branch
      %99 = sbr.rel (0) target = $region33
    $region32: #{tpu_custom_call.1} parent=1 // pred_region
      %s101 = ssub.s32 512, 512
      %102 = vsyncadd [#allocation13], %s101
      %s103 = sshll.u32 [#allocation14], 4
      %s104 = int_to_ptr.vmem [resolvable:$true] %s103
      %109 = dma.hbm_to_vmem [thread:$0]  %s7, 512, %s104, [#allocation13], 128, 128, 8
    $region33: #{tpu_custom_call.1} parent=1 // pred_fallthru
      _
    // Predicated region
    $region34: #{tpu_custom_call.1} parent=1 // pred_check
      _
    $region35: #{tpu_custom_call.1} parent=1 // pred_check_branch
      %111 = sbr.rel (0) target = $region37
    $region36: #{tpu_custom_call.1} parent=1 // pred_region
      %s113 = ssub.s32 512, 512
      %114 = vsyncadd [#allocation16], %s113
      %s115 = sshll.u32 [#allocation15], 4
      %s116 = int_to_ptr.vmem [resolvable:$true] %s115
      %121 = dma.hbm_to_vmem [thread:$0]  %s8, 512, %s116, [#allocation16], 128, 128, 8
    $region37: #{tpu_custom_call.1} parent=1 // pred_fallthru
      _
    // Predicated region
    $region38: #{tpu_custom_call.1} parent=1 // pred_check
      _
    $region39: #{tpu_custom_call.1} parent=1 // pred_check_branch
      %123 = sbr.rel (0) target = $region41
    $region40: #{tpu_custom_call.1} parent=1 // pred_region
      _
    $region41: #{tpu_custom_call.1} parent=1 // pred_fallthru
      _
    // Predicated region
    $region42: #{tpu_custom_call.1} parent=1 // pred_check
      _
    $region43: #{tpu_custom_call.1} parent=1 // pred_check_branch
      %125 = sbr.rel (0) target = $region45
    $region44: #{tpu_custom_call.1} parent=1 // pred_region
      _
    $region45: #{tpu_custom_call.1} parent=1 // pred_fallthru
      _
    // Predicated region
    $region46: #{tpu_custom_call.1} parent=1 // pred_check
      _
    $region47: #{tpu_custom_call.1} parent=1 // pred_check_branch
      %127 = sbr.rel (0) target = $region49
    $region48: #{tpu_custom_call.1} parent=1 // pred_region
      _
    $region49: #{tpu_custom_call.1} parent=1 // pred_fallthru
      _
    // Predicated region
    $region50: #{tpu_custom_call.1} parent=1 // pred_check
      _
    $region51: #{tpu_custom_call.1} parent=1 // pred_check_branch
      %129 = sbr.rel (0) target = $region53
    $region52: #{tpu_custom_call.1} parent=1 // pred_region
      _
    $region53: #{tpu_custom_call.1} parent=1 // pred_fallthru
      _
    // Predicated region
    $region54: #{tpu_custom_call.1} parent=1 // pred_check
      _
    $region55: #{tpu_custom_call.1} parent=1 // pred_check_branch
      %131 = sbr.rel (0) target = $region57
    $region56: #{tpu_custom_call.1} parent=1 // pred_region
      %132 = dma.done [#allocation4], 256
    $region57: #{tpu_custom_call.1} parent=1 // pred_fallthru
      _
    // Predicated region
    $region58: #{tpu_custom_call.1} parent=1 // pred_check
      _
    $region59: #{tpu_custom_call.1} parent=1 // pred_check_branch
      %134 = sbr.rel (0) target = $region61
    $region60: #{tpu_custom_call.1} parent=1 // pred_region
      %135 = dma.done [#allocation7], 256
    $region61: #{tpu_custom_call.1} parent=1 // pred_fallthru
      _
    // Predicated region
    $region62: #{tpu_custom_call.1} parent=1 // pred_check
      _
    $region63: #{tpu_custom_call.1} parent=1 // pred_check_branch
      %137 = sbr.rel (0) target = $region65
    $region64: #{tpu_custom_call.1} parent=1 // pred_region
      %138 = dma.done [#allocation7], 128
    $region65: #{tpu_custom_call.1} parent=1 // pred_fallthru
      _
    // Predicated region
    $region66: #{tpu_custom_call.1} parent=1 // pred_check
      _
    $region67: #{tpu_custom_call.1} parent=1 // pred_check_branch
      %140 = sbr.rel (0) target = $region69
    $region68: #{tpu_custom_call.1} parent=1 // pred_region
      %141 = dma.done [#allocation10], 512
    $region69: #{tpu_custom_call.1} parent=1 // pred_fallthru
      _
    // Predicated region
    $region70: #{tpu_custom_call.1} parent=1 // pred_check
      _
    $region71: #{tpu_custom_call.1} parent=1 // pred_check_branch
      %143 = sbr.rel (0) target = $region73
    $region72: #{tpu_custom_call.1} parent=1 // pred_region
      %144 = dma.done [#allocation10], 512
    $region73: #{tpu_custom_call.1} parent=1 // pred_fallthru
      _
    // Predicated region
    $region74: #{tpu_custom_call.1} parent=1 // pred_check
      _
    $region75: #{tpu_custom_call.1} parent=1 // pred_check_branch
      %146 = sbr.rel (0) target = $region77
    $region76: #{tpu_custom_call.1} parent=1 // pred_region
      %147 = dma.done [#allocation13], 512
    $region77: #{tpu_custom_call.1} parent=1 // pred_fallthru
      _
    // Predicated region
    $region78: #{tpu_custom_call.1} parent=1 // pred_check
      _
    $region79: #{tpu_custom_call.1} parent=1 // pred_check_branch
      %149 = sbr.rel (0) target = $region81
    $region80: #{tpu_custom_call.1} parent=1 // pred_region
      %150 = dma.done [#allocation13], 512
    $region81: #{tpu_custom_call.1} parent=1 // pred_fallthru
      _
    // Predicated region
    $region82: #{tpu_custom_call.1} parent=1 // pred_check
      _
    $region83: #{tpu_custom_call.1} parent=1 // pred_check_branch
      %152 = sbr.rel (0) target = $region85
    $region84: #{tpu_custom_call.1} parent=1 // pred_region
      %153 = dma.done [#allocation16], 512
    $region85: #{tpu_custom_call.1} parent=1 // pred_fallthru
      _
    %v154 = vld [vmem:[#allocation8] sm:$0xff]
    %vm155 = vcmask 261120
    %156 = vst.msk [vmem:[#allocation2] sm:$0xff] %vm155, %v154
    %157 = vst.msk [vmem:[#allocation2 + $0x8] sm:$0xff] %vm155, %v154
    %158 = vst.msk [vmem:[#allocation17] sm:$0xff] %vm155, %v154
    %s159 = scalar_lea.vmem [#allocation17], 72
    %160 = vst.msk [vmem:[%s159] sm:$0xff] %vm155, %v154
    %v161 = vld [vmem:[#allocation9] sm:$0xff]
    %v162 = vld [vmem:[#allocation9 + $0x8] sm:$0xff]
    %v163 = vld [vmem:[#allocation9 + $0x10] sm:$0xff]
    %v164 = vld [vmem:[#allocation9 + $0x18] sm:$0xff]
    %v165 = vld [vmem:[#allocation11] sm:$0xff]
    %v166 = vld [vmem:[#allocation11 + $0x8] sm:$0xff]
    %v167 = vld [vmem:[#allocation11 + $0x10] sm:$0xff]
    %v168 = vld [vmem:[#allocation11 + $0x18] sm:$0xff]
    %v169 = vld [vmem:[#allocation12] sm:$0xff]
    %v170 = vld [vmem:[#allocation12 + $0x8] sm:$0xff]
    %v171 = vld [vmem:[#allocation12 + $0x10] sm:$0xff]
    %v172 = vld [vmem:[#allocation12 + $0x18] sm:$0xff]
    %v173 = vld [vmem:[%s6] sm:$0x1]
    %v174 = vld [vmem:[%s6 + $0x1] sm:$0x1]
    %v175 = vld [vmem:[#allocation14] sm:$0xff]
    %v176 = vld [vmem:[#allocation14 + $0x8] sm:$0xff]
    %v177 = vld [vmem:[#allocation14 + $0x10] sm:$0xff]
    %v178 = vld [vmem:[#allocation14 + $0x18] sm:$0xff]
    %v179 = vld [vmem:[#allocation15] sm:$0xff]
    %v180 = vld [vmem:[#allocation15 + $0x8] sm:$0xff]
    %v181 = vld [vmem:[#allocation15 + $0x10] sm:$0xff]
    %v182 = vld [vmem:[#allocation15 + $0x18] sm:$0xff]
    %v183 = vld [vmem:[%s9] sm:$0xff]
    %v184 = vld [vmem:[%s9 + $0x8] sm:$0xff]
    %v185 = vld [vmem:[%s9 + $0x10] sm:$0xff]
    %v186 = vld [vmem:[%s9 + $0x18] sm:$0xff]
    %v187 = vld [vmem:[%s10] sm:$0x1]
    %v188 = vld [vmem:[%s10 + $0x1] sm:$0x1]
    %v189 = vld [vmem:[%s11] sm:$0x1]
    %v190 = vld [vmem:[%s12] sm:$0x1]
    loop: start=0, step=1, limit=8
    $region86: #{tpu_custom_call.1} parent=1 // loop_pre_header
      _
    $region87: #{tpu_custom_call.1} parent=1 // loop_header
      %s192 = sphi 0, %s196
      %p193 = scmp.ge.s32.totalorder %s192, 8
    $region88: #{tpu_custom_call.1} parent=1 // loop_header_branch
      %195 = sbr.rel (%p193) target = $region92
    $region89: #{tpu_custom_call.1} parent=1 // loop_body
      %v197 = vld [vmem:[#allocation2] sm:$0xff]
      %v198 = vld [vmem:[#allocation2 + $0x8] sm:$0xff]
      %s199 = smul.u32 %s192, 2
      %s200 = scalar_lea.vmem [#allocation3], %s199
      %v201 = vld [vmem:[%s200] sm:$0x3]
      %s202 = scalar_lea.vmem [#allocation6], %s199
      %v203 = vld [vmem:[%s202] sm:$0x3]
      %v204 = vlaneseq
      %v205 = vshrl.u32 %v204, 7
      %v206 = vsub.s32 0, %v205
      %v207 = vrot.slane %v203, %v206
      %209 = vbcast.lane.b32.xlu0 %v207, 256
      %v210 = vpop.permute.xlu0 %209
      %v211 = vlaneseq
      %v212 = vshrl.u32 %v211, 7
      %v213 = vsub.s32 1, %v212
      %v214 = vrot.slane %v203, %v213
      %216 = vbcast.lane.b32.xlu0 %v214, 256
      %v217 = vpop.permute.xlu0 %216
      %v218 = vmul.f32 %v210, %v197
      %v219 = vmul.f32 %v217, %v198
      %v220 = vsel %vm155, %v218, 0.0
      %v221 = vrot.slane %v220, 4
      %v222 = vadd.f32 %v220, %v221
      %v223 = vrot.slane %v222, 2
      %v224 = vadd.f32 %v222, %v223
      %v225 = vrot.slane %v224, 1
      %v226 = vadd.f32 %v224, %v225
      %v227 = vsel %vm155, %v219, 0.0
      %v228 = vrot.slane %v227, 4
      %v229 = vadd.f32 %v227, %v228
      %v230 = vrot.slane %v229, 2
      %v231 = vadd.f32 %v229, %v230
      %v232 = vrot.slane %v231, 1
      %v233 = vadd.f32 %v231, %v232
      %v235 = vsel %vm155, %v201, 0
      %237 = vmatprep.subr.mxu0 0.0
      %238 = vmatpush1.msra.mxu0 %v165
      %239 = vmatprep.subr.mxu0 0.0
      %240 = vmatpush1.msra.mxu0 %v166
      %241 = vmatprep.subr.mxu0 0.0
      %242 = vmatpush1.msra.mxu0 %v167
      %243 = vmatprep.subr.mxu0 0.0
      %244 = vmatpush1.msra.mxu0 %v168
      %245 = vmatprep.subr.mxu0 0.0
      %246 = vmatpush1.msra.mxu0 0.0
      %247 = vmatprep.subr.mxu0 0.0
      %248 = vmatpush1.msra.mxu0 0.0
      %249 = vmatprep.subr.mxu0 0.0
      %250 = vmatpush1.msra.mxu0 0.0
      %251 = vmatprep.subr.mxu0 0.0
      %252 = vmatpush1.msra.mxu0 0.0
      %253 = vmatprep.subr.mxu0 0.0
      %254 = vmatpush1.msra.mxu0 0.0
      %255 = vmatprep.subr.mxu0 0.0
      %256 = vmatpush1.msra.mxu0 0.0
      %257 = vmatprep.subr.mxu0 0.0
      %258 = vmatpush1.msra.mxu0 0.0
      %259 = vmatprep.subr.mxu0 0.0
      %260 = vmatpush1.msra.mxu0 0.0
      %261 = vmatprep.subr.mxu0 0.0
      %262 = vmatpush1.msra.mxu0 0.0
      %263 = vmatprep.subr.mxu0 0.0
      %264 = vmatpush1.msra.mxu0 0.0
      %265 = vmatprep.subr.mxu0 0.0
      %266 = vmatpush1.msra.mxu0 0.0
      %267 = vmatprep.subr.mxu0 0.0
      %268 = vmatpush1.msra.mxu0 0.0
      %269 = vmatprep.subr.mxu0 0.0
      %270 = vmatpush1.msra.mxu0 0.0
      %271 = vmatprep.subr.mxu0 0.0
      %272 = vmatpush1.msra.mxu0 0.0
      %273 = vmatprep.subr.mxu0 0.0
      %274 = vmatpush1.msra.mxu0 0.0
      %275 = vmatprep.subr.mxu0 0.0
      %276 = vmatpush1.msra.mxu0 0.0
      %277 = vmatprep.subr.mxu0 0.0
      %278 = vmatpush1.msra.mxu0 0.0
      %279 = vmatprep.subr.mxu0 0.0
      %280 = vmatpush1.msra.mxu0 0.0
      %281 = vmatprep.subr.mxu0 0.0
      %282 = vmatpush1.msra.mxu0 0.0
      %283 = vmatprep.subr.mxu0 0.0
      %284 = vmatpush1.msra.mxu0 0.0
      %285 = vmatprep.subr.mxu0 0.0
      %286 = vmatpush1.msra.mxu0 0.0
      %287 = vmatprep.subr.mxu0 0.0
      %288 = vmatpush1.msra.mxu0 0.0
      %289 = vmatprep.subr.mxu0 0.0
      %290 = vmatpush1.msra.mxu0 0.0
      %291 = vmatprep.subr.mxu0 0.0
      %292 = vmatpush1.msra.mxu0 0.0
      %293 = vmatprep.subr.mxu0 0.0
      %294 = vmatpush1.msra.mxu0 0.0
      %295 = vmatprep.subr.mxu0 0.0
      %296 = vmatpush1.msra.mxu0 0.0
      %297 = vmatprep.subr.mxu0 0.0
      %298 = vmatpush1.msra.mxu0 0.0
      %299 = vmatprep.subr.mxu0 0.0
      %300 = vmatpush1.msra.mxu0 0.0
      %301 = vmatprep.mubr.f32.mxu0 0.0
      %302 = vmatmul.mubr.f32.gmra.mrb[0].mxu0 %v235
      %v303 = vpop.f32.mrb[0].mxu0
      %v304 = vadd.f32 0.0, %v303
      %v305 = vpop.f32.mrb[0].mxu0
      %306 = vdwg.mxu0
      %vm309 = vcmask 1041409
      %v310 = vsel %vm309, %v233, %v226
      %v311 = vsel %vm155, %v310, 0
      %313 = vmatprep.subr.mxu0 0.0
      %314 = vmatpush1.msra.mxu0 %v161
      %315 = vmatprep.subr.mxu0 0.0
      %316 = vmatpush1.msra.mxu0 %v162
      %317 = vmatprep.subr.mxu0 0.0
      %318 = vmatpush1.msra.mxu0 %v163
      %319 = vmatprep.subr.mxu0 0.0
      %320 = vmatpush1.msra.mxu0 %v164
      %321 = vmatprep.subr.mxu0 0.0
      %322 = vmatpush1.msra.mxu0 0.0
      %323 = vmatprep.subr.mxu0 0.0
      %324 = vmatpush1.msra.mxu0 0.0
      %325 = vmatprep.subr.mxu0 0.0
      %326 = vmatpush1.msra.mxu0 0.0
      %327 = vmatprep.subr.mxu0 0.0
      %328 = vmatpush1.msra.mxu0 0.0
      %329 = vmatprep.subr.mxu0 0.0
      %330 = vmatpush1.msra.mxu0 0.0
      %331 = vmatprep.subr.mxu0 0.0
      %332 = vmatpush1.msra.mxu0 0.0
      %333 = vmatprep.subr.mxu0 0.0
      %334 = vmatpush1.msra.mxu0 0.0
      %335 = vmatprep.subr.mxu0 0.0
      %336 = vmatpush1.msra.mxu0 0.0
      %337 = vmatprep.subr.mxu0 0.0
      %338 = vmatpush1.msra.mxu0 0.0
      %339 = vmatprep.subr.mxu0 0.0
      %340 = vmatpush1.msra.mxu0 0.0
      %341 = vmatprep.subr.mxu0 0.0
      %342 = vmatpush1.msra.mxu0 0.0
      %343 = vmatprep.subr.mxu0 0.0
      %344 = vmatpush1.msra.mxu0 0.0
      %345 = vmatprep.subr.mxu0 0.0
      %346 = vmatpush1.msra.mxu0 0.0
      %347 = vmatprep.subr.mxu0 0.0
      %348 = vmatpush1.msra.mxu0 0.0
      %349 = vmatprep.subr.mxu0 0.0
      %350 = vmatpush1.msra.mxu0 0.0
      %351 = vmatprep.subr.mxu0 0.0
      %352 = vmatpush1.msra.mxu0 0.0
      %353 = vmatprep.subr.mxu0 0.0
      %354 = vmatpush1.msra.mxu0 0.0
      %355 = vmatprep.subr.mxu0 0.0
      %356 = vmatpush1.msra.mxu0 0.0
      %357 = vmatprep.subr.mxu0 0.0
      %358 = vmatpush1.msra.mxu0 0.0
      %359 = vmatprep.subr.mxu0 0.0
      %360 = vmatpush1.msra.mxu0 0.0
      %361 = vmatprep.subr.mxu0 0.0
      %362 = vmatpush1.msra.mxu0 0.0
      %363 = vmatprep.subr.mxu0 0.0
      %364 = vmatpush1.msra.mxu0 0.0
      %365 = vmatprep.subr.mxu0 0.0
      %366 = vmatpush1.msra.mxu0 0.0
      %367 = vmatprep.subr.mxu0 0.0
      %368 = vmatpush1.msra.mxu0 0.0
      %369 = vmatprep.subr.mxu0 0.0
      %370 = vmatpush1.msra.mxu0 0.0
      %371 = vmatprep.subr.mxu0 0.0
      %372 = vmatpush1.msra.mxu0 0.0
      %373 = vmatprep.subr.mxu0 0.0
      %374 = vmatpush1.msra.mxu0 0.0
      %375 = vmatprep.subr.mxu0 0.0
      %376 = vmatpush1.msra.mxu0 0.0
      %377 = vmatprep.mubr.f32.mxu0 0.0
      %378 = vmatmul.mubr.f32.gmra.mrb[0].mxu0 %v311
      %v379 = vpop.f32.mrb[0].mxu0
      %v380 = vadd.f32 %v304, %v379
      %v381 = vpop.f32.mrb[0].mxu0
      %382 = vdwg.mxu0
      %v383 = vlaneseq
      %v384 = vshrl.u32 %v383, 7
      %v385 = vsub.s32 0, %v384
      %v386 = vrot.slane %v173, %v385
      %v387 = vadd.f32 %v380, %v386
      %v388 = vmax.f32 %v387, 0.0
      %v389 = vlaneseq
      %v390 = vshrl.u32 %v389, 7
      %v391 = vsub.s32 0, %v390
      %v392 = vrot.slane %v174, %v391
      %v394 = vsel %vm155, %v388, 0
      %396 = vmatprep.subr.mxu0 0.0
      %397 = vmatpush1.msra.mxu0 %v169
      %398 = vmatprep.subr.mxu0 0.0
      %399 = vmatpush1.msra.mxu0 %v170
      %400 = vmatprep.subr.mxu0 0.0
      %401 = vmatpush1.msra.mxu0 %v171
      %402 = vmatprep.subr.mxu0 0.0
      %403 = vmatpush1.msra.mxu0 %v172
      %404 = vmatprep.subr.mxu0 0.0
      %405 = vmatpush1.msra.mxu0 0.0
      %406 = vmatprep.subr.mxu0 0.0
      %407 = vmatpush1.msra.mxu0 0.0
      %408 = vmatprep.subr.mxu0 0.0
      %409 = vmatpush1.msra.mxu0 0.0
      %410 = vmatprep.subr.mxu0 0.0
      %411 = vmatpush1.msra.mxu0 0.0
      %412 = vmatprep.subr.mxu0 0.0
      %413 = vmatpush1.msra.mxu0 0.0
      %414 = vmatprep.subr.mxu0 0.0
      %415 = vmatpush1.msra.mxu0 0.0
      %416 = vmatprep.subr.mxu0 0.0
      %417 = vmatpush1.msra.mxu0 0.0
      %418 = vmatprep.subr.mxu0 0.0
      %419 = vmatpush1.msra.mxu0 0.0
      %420 = vmatprep.subr.mxu0 0.0
      %421 = vmatpush1.msra.mxu0 0.0
      %422 = vmatprep.subr.mxu0 0.0
      %423 = vmatpush1.msra.mxu0 0.0
      %424 = vmatprep.subr.mxu0 0.0
      %425 = vmatpush1.msra.mxu0 0.0
      %426 = vmatprep.subr.mxu0 0.0
      %427 = vmatpush1.msra.mxu0 0.0
      %428 = vmatprep.subr.mxu0 0.0
      %429 = vmatpush1.msra.mxu0 0.0
      %430 = vmatprep.subr.mxu0 0.0
      %431 = vmatpush1.msra.mxu0 0.0
      %432 = vmatprep.subr.mxu0 0.0
      %433 = vmatpush1.msra.mxu0 0.0
      %434 = vmatprep.subr.mxu0 0.0
      %435 = vmatpush1.msra.mxu0 0.0
      %436 = vmatprep.subr.mxu0 0.0
      %437 = vmatpush1.msra.mxu0 0.0
      %438 = vmatprep.subr.mxu0 0.0
      %439 = vmatpush1.msra.mxu0 0.0
      %440 = vmatprep.subr.mxu0 0.0
      %441 = vmatpush1.msra.mxu0 0.0
      %442 = vmatprep.subr.mxu0 0.0
      %443 = vmatpush1.msra.mxu0 0.0
      %444 = vmatprep.subr.mxu0 0.0
      %445 = vmatpush1.msra.mxu0 0.0
      %446 = vmatprep.subr.mxu0 0.0
      %447 = vmatpush1.msra.mxu0 0.0
      %448 = vmatprep.subr.mxu0 0.0
      %449 = vmatpush1.msra.mxu0 0.0
      %450 = vmatprep.subr.mxu0 0.0
      %451 = vmatpush1.msra.mxu0 0.0
      %452 = vmatprep.subr.mxu0 0.0
      %453 = vmatpush1.msra.mxu0 0.0
      %454 = vmatprep.subr.mxu0 0.0
      %455 = vmatpush1.msra.mxu0 0.0
      %456 = vmatprep.subr.mxu0 0.0
      %457 = vmatpush1.msra.mxu0 0.0
      %458 = vmatprep.subr.mxu0 0.0
      %459 = vmatpush1.msra.mxu0 0.0
      %460 = vmatprep.mubr.f32.mxu0 0.0
      %461 = vmatmul.mubr.f32.gmra.mrb[0].mxu0 %v394
      %v462 = vpop.f32.mrb[0].mxu0
      %v463 = vadd.f32 %v392, %v462
      %v464 = vpop.f32.mrb[0].mxu0
      %465 = vdwg.mxu0
      %v467 = vsel %vm155, %v463, 0
      %469 = vmatprep.subr.mxu0 0.0
      %470 = vmatpush1.msra.mxu0 %v175
      %471 = vmatprep.subr.mxu0 0.0
      %472 = vmatpush1.msra.mxu0 %v176
      %473 = vmatprep.subr.mxu0 0.0
      %474 = vmatpush1.msra.mxu0 %v177
      %475 = vmatprep.subr.mxu0 0.0
      %476 = vmatpush1.msra.mxu0 %v178
      %477 = vmatprep.subr.mxu0 0.0
      %478 = vmatpush1.msra.mxu0 0.0
      %479 = vmatprep.subr.mxu0 0.0
      %480 = vmatpush1.msra.mxu0 0.0
      %481 = vmatprep.subr.mxu0 0.0
      %482 = vmatpush1.msra.mxu0 0.0
      %483 = vmatprep.subr.mxu0 0.0
      %484 = vmatpush1.msra.mxu0 0.0
      %485 = vmatprep.subr.mxu0 0.0
      %486 = vmatpush1.msra.mxu0 0.0
      %487 = vmatprep.subr.mxu0 0.0
      %488 = vmatpush1.msra.mxu0 0.0
      %489 = vmatprep.subr.mxu0 0.0
      %490 = vmatpush1.msra.mxu0 0.0
      %491 = vmatprep.subr.mxu0 0.0
      %492 = vmatpush1.msra.mxu0 0.0
      %493 = vmatprep.subr.mxu0 0.0
      %494 = vmatpush1.msra.mxu0 0.0
      %495 = vmatprep.subr.mxu0 0.0
      %496 = vmatpush1.msra.mxu0 0.0
      %497 = vmatprep.subr.mxu0 0.0
      %498 = vmatpush1.msra.mxu0 0.0
      %499 = vmatprep.subr.mxu0 0.0
      %500 = vmatpush1.msra.mxu0 0.0
      %501 = vmatprep.subr.mxu0 0.0
      %502 = vmatpush1.msra.mxu0 0.0
      %503 = vmatprep.subr.mxu0 0.0
      %504 = vmatpush1.msra.mxu0 0.0
      %505 = vmatprep.subr.mxu0 0.0
      %506 = vmatpush1.msra.mxu0 0.0
      %507 = vmatprep.subr.mxu0 0.0
      %508 = vmatpush1.msra.mxu0 0.0
      %509 = vmatprep.subr.mxu0 0.0
      %510 = vmatpush1.msra.mxu0 0.0
      %511 = vmatprep.subr.mxu0 0.0
      %512 = vmatpush1.msra.mxu0 0.0
      %513 = vmatprep.subr.mxu0 0.0
      %514 = vmatpush1.msra.mxu0 0.0
      %515 = vmatprep.subr.mxu0 0.0
      %516 = vmatpush1.msra.mxu0 0.0
      %517 = vmatprep.subr.mxu0 0.0
      %518 = vmatpush1.msra.mxu0 0.0
      %519 = vmatprep.subr.mxu0 0.0
      %520 = vmatpush1.msra.mxu0 0.0
      %521 = vmatprep.subr.mxu0 0.0
      %522 = vmatpush1.msra.mxu0 0.0
      %523 = vmatprep.subr.mxu0 0.0
      %524 = vmatpush1.msra.mxu0 0.0
      %525 = vmatprep.subr.mxu0 0.0
      %526 = vmatpush1.msra.mxu0 0.0
      %527 = vmatprep.subr.mxu0 0.0
      %528 = vmatpush1.msra.mxu0 0.0
      %529 = vmatprep.subr.mxu0 0.0
      %530 = vmatpush1.msra.mxu0 0.0
      %531 = vmatprep.subr.mxu0 0.0
      %532 = vmatpush1.msra.mxu0 0.0
      %533 = vmatprep.mubr.f32.mxu0 0.0
      %534 = vmatmul.mubr.f32.gmra.mrb[0].mxu0 %v467
      %v535 = vpop.f32.mrb[0].mxu0
      %v536 = vadd.f32 0.0, %v535
      %v537 = vpop.f32.mrb[0].mxu0
      %538 = vdwg.mxu0
      %v540 = vsel %vm155, %v197, 0
      %v543 = vsel %vm155, %v198, 0
      %545 = vmatprep.subr.mxu0 0.0
      %546 = vmatpush1.msra.mxu0 %v179
      %547 = vmatprep.subr.mxu0 0.0
      %548 = vmatpush1.msra.mxu0 %v180
      %549 = vmatprep.subr.mxu0 0.0
      %550 = vmatpush1.msra.mxu0 %v181
      %551 = vmatprep.subr.mxu0 0.0
      %552 = vmatpush1.msra.mxu0 %v182
      %553 = vmatprep.subr.mxu0 0.0
      %554 = vmatpush1.msra.mxu0 0.0
      %555 = vmatprep.subr.mxu0 0.0
      %556 = vmatpush1.msra.mxu0 0.0
      %557 = vmatprep.subr.mxu0 0.0
      %558 = vmatpush1.msra.mxu0 0.0
      %559 = vmatprep.subr.mxu0 0.0
      %560 = vmatpush1.msra.mxu0 0.0
      %561 = vmatprep.subr.mxu0 0.0
      %562 = vmatpush1.msra.mxu0 0.0
      %563 = vmatprep.subr.mxu0 0.0
      %564 = vmatpush1.msra.mxu0 0.0
      %565 = vmatprep.subr.mxu0 0.0
      %566 = vmatpush1.msra.mxu0 0.0
      %567 = vmatprep.subr.mxu0 0.0
      %568 = vmatpush1.msra.mxu0 0.0
      %569 = vmatprep.subr.mxu0 0.0
      %570 = vmatpush1.msra.mxu0 0.0
      %571 = vmatprep.subr.mxu0 0.0
      %572 = vmatpush1.msra.mxu0 0.0
      %573 = vmatprep.subr.mxu0 0.0
      %574 = vmatpush1.msra.mxu0 0.0
      %575 = vmatprep.subr.mxu0 0.0
      %576 = vmatpush1.msra.mxu0 0.0
      %577 = vmatprep.subr.mxu0 0.0
      %578 = vmatpush1.msra.mxu0 0.0
      %579 = vmatprep.subr.mxu0 0.0
      %580 = vmatpush1.msra.mxu0 0.0
      %581 = vmatprep.subr.mxu0 0.0
      %582 = vmatpush1.msra.mxu0 0.0
      %583 = vmatprep.subr.mxu0 0.0
      %584 = vmatpush1.msra.mxu0 0.0
      %585 = vmatprep.subr.mxu0 0.0
      %586 = vmatpush1.msra.mxu0 0.0
      %587 = vmatprep.subr.mxu0 0.0
      %588 = vmatpush1.msra.mxu0 0.0
      %589 = vmatprep.subr.mxu0 0.0
      %590 = vmatpush1.msra.mxu0 0.0
      %591 = vmatprep.subr.mxu0 0.0
      %592 = vmatpush1.msra.mxu0 0.0
      %593 = vmatprep.subr.mxu0 0.0
      %594 = vmatpush1.msra.mxu0 0.0
      %595 = vmatprep.subr.mxu0 0.0
      %596 = vmatpush1.msra.mxu0 0.0
      %597 = vmatprep.subr.mxu0 0.0
      %598 = vmatpush1.msra.mxu0 0.0
      %599 = vmatprep.subr.mxu0 0.0
      %600 = vmatpush1.msra.mxu0 0.0
      %601 = vmatprep.subr.mxu0 0.0
      %602 = vmatpush1.msra.mxu0 0.0
      %603 = vmatprep.subr.mxu0 0.0
      %604 = vmatpush1.msra.mxu0 0.0
      %605 = vmatprep.subr.mxu0 0.0
      %606 = vmatpush1.msra.mxu0 0.0
      %607 = vmatprep.subr.mxu0 0.0
      %608 = vmatpush1.msra.mxu0 0.0
      %609 = vmatprep.mubr.f32.mxu0 0.0
      %610 = vmatmul.mubr.f32.gmra.mrb[0].mxu0 %v540
      %v611 = vpop.f32.mrb[0].mxu0
      %v612 = vadd.f32 0.0, %v611
      %v613 = vpop.f32.mrb[0].mxu0
      %614 = vmatprep.mubr.f32.mxu0 0.0
      %615 = vmatmul.mubr.f32.gmra.mrb[0].mxu0 %v543
      %v616 = vpop.f32.mrb[0].mxu0
      %v617 = vadd.f32 0.0, %v616
      %v618 = vpop.f32.mrb[0].mxu0
      %619 = vdwg.mxu0
      %v622 = vunpack.c.l.s4 1966171168
      %v623 = vunpack.c.0.s8 %v622
      %v624 = vlaneseq
      %v625 = vshrl.u32 %v624, 7
      %v626 = vsub.s32 %v623, %v625
      %v627 = vrot.slane %v536, %v626
      %v628 = vcombine.high %v627, %v627
      %v630 = vunpack.c.l.s4 1966171168
      %v631 = vunpack.c.0.s8 %v630
      %v632 = vlaneseq
      %v633 = vshrl.u32 %v632, 7
      %v634 = vsub.s32 %v631, %v633
      %v635 = vrot.slane %v627, %v634
      %v637 = vunpack.c.l.s4 1966171168
      %v638 = vunpack.c.0.s8 %v637
      %v639 = vlaneseq
      %v640 = vshrl.u32 %v639, 7
      %v641 = vsub.s32 %v638, %v640
      %v642 = vrot.slane %v628, %v641
      %v643 = vlaneseq
      %v644 = vshrl.u32 %v643, 7
      %v645 = vsub.s32 0, %v644
      %v646 = vrot.slane %v635, %v645
      %v647 = vlaneseq
      %v648 = vshrl.u32 %v647, 7
      %v649 = vsub.s32 0, %v648
      %v650 = vrot.slane %v642, %v649
      %v653 = vmul.f32 %v210, %v646
      %v654 = vmul.f32 %v217, %v650
      %v655 = vadd.f32 %v612, %v653
      %v656 = vadd.f32 %v617, %v654
      %v657 = vlaneseq
      %v658 = vshrl.u32 %v657, 7
      %v659 = vsub.s32 0, %v658
      %v660 = vrot.slane %v187, %v659
      %v661 = vadd.f32 %v655, %v660
      %v662 = vadd.f32 %v656, %v660
      %v663 = vlaneseq
      %v664 = vshrl.u32 %v663, 7
      %v665 = vsub.s32 0, %v664
      %v666 = vrot.slane %v188, %v665
      %v668 = vsel %vm155, 0.0, 0
      %670 = vmatprep.subr.mxu0 0.0
      %671 = vmatpush1.msra.mxu0 %v183
      %672 = vmatprep.subr.mxu0 0.0
      %673 = vmatpush1.msra.mxu0 %v184
      %674 = vmatprep.subr.mxu0 0.0
      %675 = vmatpush1.msra.mxu0 %v185
      %676 = vmatprep.subr.mxu0 0.0
      %677 = vmatpush1.msra.mxu0 %v186
      %678 = vmatprep.subr.mxu0 0.0
      %679 = vmatpush1.msra.mxu0 0.0
      %680 = vmatprep.subr.mxu0 0.0
      %681 = vmatpush1.msra.mxu0 0.0
      %682 = vmatprep.subr.mxu0 0.0
      %683 = vmatpush1.msra.mxu0 0.0
      %684 = vmatprep.subr.mxu0 0.0
      %685 = vmatpush1.msra.mxu0 0.0
      %686 = vmatprep.subr.mxu0 0.0
      %687 = vmatpush1.msra.mxu0 0.0
      %688 = vmatprep.subr.mxu0 0.0
      %689 = vmatpush1.msra.mxu0 0.0
      %690 = vmatprep.subr.mxu0 0.0
      %691 = vmatpush1.msra.mxu0 0.0
      %692 = vmatprep.subr.mxu0 0.0
      %693 = vmatpush1.msra.mxu0 0.0
      %694 = vmatprep.subr.mxu0 0.0
      %695 = vmatpush1.msra.mxu0 0.0
      %696 = vmatprep.subr.mxu0 0.0
      %697 = vmatpush1.msra.mxu0 0.0
      %698 = vmatprep.subr.mxu0 0.0
      %699 = vmatpush1.msra.mxu0 0.0
      %700 = vmatprep.subr.mxu0 0.0
      %701 = vmatpush1.msra.mxu0 0.0
      %702 = vmatprep.subr.mxu0 0.0
      %703 = vmatpush1.msra.mxu0 0.0
      %704 = vmatprep.subr.mxu0 0.0
      %705 = vmatpush1.msra.mxu0 0.0
      %706 = vmatprep.subr.mxu0 0.0
      %707 = vmatpush1.msra.mxu0 0.0
      %708 = vmatprep.subr.mxu0 0.0
      %709 = vmatpush1.msra.mxu0 0.0
      %710 = vmatprep.subr.mxu0 0.0
      %711 = vmatpush1.msra.mxu0 0.0
      %712 = vmatprep.subr.mxu0 0.0
      %713 = vmatpush1.msra.mxu0 0.0
      %714 = vmatprep.subr.mxu0 0.0
      %715 = vmatpush1.msra.mxu0 0.0
      %716 = vmatprep.subr.mxu0 0.0
      %717 = vmatpush1.msra.mxu0 0.0
      %718 = vmatprep.subr.mxu0 0.0
      %719 = vmatpush1.msra.mxu0 0.0
      %720 = vmatprep.subr.mxu0 0.0
      %721 = vmatpush1.msra.mxu0 0.0
      %722 = vmatprep.subr.mxu0 0.0
      %723 = vmatpush1.msra.mxu0 0.0
      %724 = vmatprep.subr.mxu0 0.0
      %725 = vmatpush1.msra.mxu0 0.0
      %726 = vmatprep.subr.mxu0 0.0
      %727 = vmatpush1.msra.mxu0 0.0
      %728 = vmatprep.subr.mxu0 0.0
      %729 = vmatpush1.msra.mxu0 0.0
      %730 = vmatprep.subr.mxu0 0.0
      %731 = vmatpush1.msra.mxu0 0.0
      %732 = vmatprep.subr.mxu0 0.0
      %733 = vmatpush1.msra.mxu0 0.0
      %734 = vmatprep.mubr.f32.mxu0 0.0
      %735 = vmatmul.mubr.f32.gmra.mrb[0].mxu0 %v668
      %v736 = vpop.f32.mrb[0].mxu0
      %v737 = vadd.f32 %v666, %v736
      %v738 = vpop.f32.mrb[0].mxu0
      %739 = vdwg.mxu0
      %v741 = vrot.slane %v737, 1
      %v744 = vadd.f32 %v661, %v737
      %v745 = vadd.f32 %v662, %v741
      %v746 = vxor.u32 %v744, 2147483648
      %v747 = vxor.u32 %v745, 2147483648
      %v748 = vmul.f32 %v746, 1.442695
      %v749 = vpow.pop %v748
      %v750 = vmul.f32 %v747, 1.442695
      %v751 = vpow.pop %v750
      %v752 = vadd.f32 %v749, 1.0
      %v753 = vadd.f32 %v751, 1.0
      %v754 = vrcp.pop %v752
      %v755 = vmul.f32 1.0, %v754
      %v756 = vrcp.pop %v753
      %v757 = vmul.f32 1.0, %v756
      %758 = vrot.lane.b32.xlu0 %v737, 64
      %v759 = vpop.permute.xlu0 %758
      %760 = vrot.lane.b32.xlu0 %v741, 64
      %v761 = vpop.permute.xlu0 %760
      %v764 = vmul.f32 %v755, %v759
      %v765 = vmul.f32 %v757, %v761
      %768 = vrot.lane.b32.xlu0 %v764, 64
      %v769 = vpop.permute.xlu0 %768
      %770 = vrot.lane.b32.xlu0 %v765, 64
      %v771 = vpop.permute.xlu0 %770
      %v774 = vadd.f32 %v661, %v769
      %v775 = vadd.f32 %v662, %v771
      %v776 = vtanh.pop %v774
      %v777 = vtanh.pop %v775
      %v778 = vsub.f32 1.0, %v755
      %v779 = vsub.f32 1.0, %v757
      %782 = vrot.lane.b32.xlu0 %v776, 96
      %v783 = vpop.permute.xlu0 %782
      %784 = vrot.lane.b32.xlu0 %v777, 96
      %v785 = vpop.permute.xlu0 %784
      %v788 = vmul.f32 %v778, %v783
      %v789 = vmul.f32 %v779, %v785
      %v790 = vmul.f32 %v755, 0.0
      %v791 = vmul.f32 %v757, 0.0
      %v792 = vadd.f32 %v788, %v790
      %v793 = vadd.f32 %v789, %v791
      %796 = vrot.lane.b32.xlu0 %v792, 96
      %v797 = vpop.permute.xlu0 %796
      %798 = vrot.lane.b32.xlu0 %v793, 96
      %v799 = vpop.permute.xlu0 %798
      %vm802 = vcmask 253952
      %803 = vst.msk [vmem:[#allocation2] sm:$0x1] %vm802, %v797
      %804 = vst.msk [vmem:[#allocation2 + $0x8] sm:$0x1] %vm802, %v799
      %v805 = vrot.slane %v793, 7
      %v806 = vsel %vm309, %v805, %v792
      %807 = vrot.lane.b32.xlu0 %v806, 96
      %v808 = vpop.permute.xlu0 %807
      %v809 = vsel %vm155, %v808, 0
      %811 = vmatprep.subr.mxu0 0.0
      %812 = vmatpush1.msra.mxu0 %v183
      %813 = vmatprep.subr.mxu0 0.0
      %814 = vmatpush1.msra.mxu0 %v184
      %815 = vmatprep.subr.mxu0 0.0
      %816 = vmatpush1.msra.mxu0 %v185
      %817 = vmatprep.subr.mxu0 0.0
      %818 = vmatpush1.msra.mxu0 %v186
      %819 = vmatprep.subr.mxu0 0.0
      %820 = vmatpush1.msra.mxu0 0.0
      %821 = vmatprep.subr.mxu0 0.0
      %822 = vmatpush1.msra.mxu0 0.0
      %823 = vmatprep.subr.mxu0 0.0
      %824 = vmatpush1.msra.mxu0 0.0
      %825 = vmatprep.subr.mxu0 0.0
      %826 = vmatpush1.msra.mxu0 0.0
      %827 = vmatprep.subr.mxu0 0.0
      %828 = vmatpush1.msra.mxu0 0.0
      %829 = vmatprep.subr.mxu0 0.0
      %830 = vmatpush1.msra.mxu0 0.0
      %831 = vmatprep.subr.mxu0 0.0
      %832 = vmatpush1.msra.mxu0 0.0
      %833 = vmatprep.subr.mxu0 0.0
      %834 = vmatpush1.msra.mxu0 0.0
      %835 = vmatprep.subr.mxu0 0.0
      %836 = vmatpush1.msra.mxu0 0.0
      %837 = vmatprep.subr.mxu0 0.0
      %838 = vmatpush1.msra.mxu0 0.0
      %839 = vmatprep.subr.mxu0 0.0
      %840 = vmatpush1.msra.mxu0 0.0
      %841 = vmatprep.subr.mxu0 0.0
      %842 = vmatpush1.msra.mxu0 0.0
      %843 = vmatprep.subr.mxu0 0.0
      %844 = vmatpush1.msra.mxu0 0.0
      %845 = vmatprep.subr.mxu0 0.0
      %846 = vmatpush1.msra.mxu0 0.0
      %847 = vmatprep.subr.mxu0 0.0
      %848 = vmatpush1.msra.mxu0 0.0
      %849 = vmatprep.subr.mxu0 0.0
      %850 = vmatpush1.msra.mxu0 0.0
      %851 = vmatprep.subr.mxu0 0.0
      %852 = vmatpush1.msra.mxu0 0.0
      %853 = vmatprep.subr.mxu0 0.0
      %854 = vmatpush1.msra.mxu0 0.0
      %855 = vmatprep.subr.mxu0 0.0
      %856 = vmatpush1.msra.mxu0 0.0
      %857 = vmatprep.subr.mxu0 0.0
      %858 = vmatpush1.msra.mxu0 0.0
      %859 = vmatprep.subr.mxu0 0.0
      %860 = vmatpush1.msra.mxu0 0.0
      %861 = vmatprep.subr.mxu0 0.0
      %862 = vmatpush1.msra.mxu0 0.0
      %863 = vmatprep.subr.mxu0 0.0
      %864 = vmatpush1.msra.mxu0 0.0
      %865 = vmatprep.subr.mxu0 0.0
      %866 = vmatpush1.msra.mxu0 0.0
      %867 = vmatprep.subr.mxu0 0.0
      %868 = vmatpush1.msra.mxu0 0.0
      %869 = vmatprep.subr.mxu0 0.0
      %870 = vmatpush1.msra.mxu0 0.0
      %871 = vmatprep.subr.mxu0 0.0
      %872 = vmatpush1.msra.mxu0 0.0
      %873 = vmatprep.subr.mxu0 0.0
      %874 = vmatpush1.msra.mxu0 0.0
      %875 = vmatprep.mubr.f32.mxu0 0.0
      %876 = vmatmul.mubr.f32.gmra.mrb[0].mxu0 %v809
      %v877 = vpop.f32.mrb[0].mxu0
      %v878 = vadd.f32 %v666, %v877
      %v879 = vpop.f32.mrb[0].mxu0
      %880 = vdwg.mxu0
      %v882 = vrot.slane %v878, 7
      %v885 = vadd.f32 %v661, %v882
      %v886 = vadd.f32 %v662, %v878
      %v887 = vxor.u32 %v885, 2147483648
      %v888 = vxor.u32 %v886, 2147483648
      %v889 = vmul.f32 %v887, 1.442695
      %v890 = vpow.pop %v889
      %v891 = vmul.f32 %v888, 1.442695
      %v892 = vpow.pop %v891
      %v893 = vadd.f32 %v890, 1.0
      %v894 = vadd.f32 %v892, 1.0
      %v895 = vrcp.pop %v893
      %v896 = vmul.f32 1.0, %v895
      %v897 = vrcp.pop %v894
      %v898 = vmul.f32 1.0, %v897
      %899 = vrot.lane.b32.xlu0 %v882, 64
      %v900 = vpop.permute.xlu0 %899
      %901 = vrot.lane.b32.xlu0 %v878, 64
      %v902 = vpop.permute.xlu0 %901
      %v905 = vmul.f32 %v896, %v900
      %v906 = vmul.f32 %v898, %v902
      %909 = vrot.lane.b32.xlu0 %v905, 64
      %v910 = vpop.permute.xlu0 %909
      %911 = vrot.lane.b32.xlu0 %v906, 64
      %v912 = vpop.permute.xlu0 %911
      %v915 = vadd.f32 %v661, %v910
      %v916 = vadd.f32 %v662, %v912
      %v917 = vtanh.pop %v915
      %v918 = vtanh.pop %v916
      %v919 = vsub.f32 1.0, %v896
      %v920 = vsub.f32 1.0, %v898
      %923 = vrot.lane.b32.xlu0 %v917, 96
      %v924 = vpop.permute.xlu0 %923
      %925 = vrot.lane.b32.xlu0 %v918, 96
      %v926 = vpop.permute.xlu0 %925
      %v929 = vmul.f32 %v919, %v924
      %v930 = vmul.f32 %v920, %v926
      %v931 = vrot.slane %v792, 7
      %v934 = vmul.f32 %v896, %v931
      %v935 = vmul.f32 %v898, %v805
      %v936 = vadd.f32 %v929, %v934
      %v937 = vadd.f32 %v930, %v935
      %940 = vrot.lane.b32.xlu0 %v936, 96
      %v941 = vpop.permute.xlu0 %940
      %942 = vrot.lane.b32.xlu0 %v937, 96
      %v943 = vpop.permute.xlu0 %942
      %vm946 = vcmask 254977
      %947 = vst.msk [vmem:[#allocation2] sm:$0x2] %vm946, %v941
      %948 = vst.msk [vmem:[#allocation2 + $0x8] sm:$0x2] %vm946, %v943
      %v949 = vrot.slane %v936, 1
      %v950 = vsel %vm309, %v937, %v949
      %951 = vrot.lane.b32.xlu0 %v950, 96
      %v952 = vpop.permute.xlu0 %951
      %v953 = vsel %vm155, %v952, 0
      %955 = vmatprep.subr.mxu0 0.0
      %956 = vmatpush1.msra.mxu0 %v183
      %957 = vmatprep.subr.mxu0 0.0
      %958 = vmatpush1.msra.mxu0 %v184
      %959 = vmatprep.subr.mxu0 0.0
      %960 = vmatpush1.msra.mxu0 %v185
      %961 = vmatprep.subr.mxu0 0.0
      %962 = vmatpush1.msra.mxu0 %v186
      %963 = vmatprep.subr.mxu0 0.0
      %964 = vmatpush1.msra.mxu0 0.0
      %965 = vmatprep.subr.mxu0 0.0
      %966 = vmatpush1.msra.mxu0 0.0
      %967 = vmatprep.subr.mxu0 0.0
      %968 = vmatpush1.msra.mxu0 0.0
      %969 = vmatprep.subr.mxu0 0.0
      %970 = vmatpush1.msra.mxu0 0.0
      %971 = vmatprep.subr.mxu0 0.0
      %972 = vmatpush1.msra.mxu0 0.0
      %973 = vmatprep.subr.mxu0 0.0
      %974 = vmatpush1.msra.mxu0 0.0
      %975 = vmatprep.subr.mxu0 0.0
      %976 = vmatpush1.msra.mxu0 0.0
      %977 = vmatprep.subr.mxu0 0.0
      %978 = vmatpush1.msra.mxu0 0.0
      %979 = vmatprep.subr.mxu0 0.0
      %980 = vmatpush1.msra.mxu0 0.0
      %981 = vmatprep.subr.mxu0 0.0
      %982 = vmatpush1.msra.mxu0 0.0
      %983 = vmatprep.subr.mxu0 0.0
      %984 = vmatpush1.msra.mxu0 0.0
      %985 = vmatprep.subr.mxu0 0.0
      %986 = vmatpush1.msra.mxu0 0.0
      %987 = vmatprep.subr.mxu0 0.0
      %988 = vmatpush1.msra.mxu0 0.0
      %989 = vmatprep.subr.mxu0 0.0
      %990 = vmatpush1.msra.mxu0 0.0
      %991 = vmatprep.subr.mxu0 0.0
      %992 = vmatpush1.msra.mxu0 0.0
      %993 = vmatprep.subr.mxu0 0.0
      %994 = vmatpush1.msra.mxu0 0.0
      %995 = vmatprep.subr.mxu0 0.0
      %996 = vmatpush1.msra.mxu0 0.0
      %997 = vmatprep.subr.mxu0 0.0
      %998 = vmatpush1.msra.mxu0 0.0
      %999 = vmatprep.subr.mxu0 0.0
      %1000 = vmatpush1.msra.mxu0 0.0
      %1001 = vmatprep.subr.mxu0 0.0
      %1002 = vmatpush1.msra.mxu0 0.0
      %1003 = vmatprep.subr.mxu0 0.0
      %1004 = vmatpush1.msra.mxu0 0.0
      %1005 = vmatprep.subr.mxu0 0.0
      %1006 = vmatpush1.msra.mxu0 0.0
      %1007 = vmatprep.subr.mxu0 0.0
      %1008 = vmatpush1.msra.mxu0 0.0
      %1009 = vmatprep.subr.mxu0 0.0
      %1010 = vmatpush1.msra.mxu0 0.0
      %1011 = vmatprep.subr.mxu0 0.0
      %1012 = vmatpush1.msra.mxu0 0.0
      %1013 = vmatprep.subr.mxu0 0.0
      %1014 = vmatpush1.msra.mxu0 0.0
      %1015 = vmatprep.subr.mxu0 0.0
      %1016 = vmatpush1.msra.mxu0 0.0
      %1017 = vmatprep.subr.mxu0 0.0
      %1018 = vmatpush1.msra.mxu0 0.0
      %1019 = vmatprep.mubr.f32.mxu0 0.0
      %1020 = vmatmul.mubr.f32.gmra.mrb[0].mxu0 %v953
      %v1021 = vpop.f32.mrb[0].mxu0
      %v1022 = vadd.f32 %v666, %v1021
      %v1023 = vpop.f32.mrb[0].mxu0
      %1024 = vdwg.mxu0
      %v1026 = vrot.slane %v1022, 6
      %v1027 = vrot.slane %v1022, 7
      %v1030 = vadd.f32 %v661, %v1026
      %v1031 = vadd.f32 %v662, %v1027
      %v1032 = vxor.u32 %v1030, 2147483648
      %v1033 = vxor.u32 %v1031, 2147483648
      %v1034 = vmul.f32 %v1032, 1.442695
      %v1035 = vpow.pop %v1034
      %v1036 = vmul.f32 %v1033, 1.442695
      %v1037 = vpow.pop %v1036
      %v1038 = vadd.f32 %v1035, 1.0
      %v1039 = vadd.f32 %v1037, 1.0
      %v1040 = vrcp.pop %v1038
      %v1041 = vmul.f32 1.0, %v1040
      %v1042 = vrcp.pop %v1039
      %v1043 = vmul.f32 1.0, %v1042
      %1044 = vrot.lane.b32.xlu0 %v1026, 64
      %v1045 = vpop.permute.xlu0 %1044
      %1046 = vrot.lane.b32.xlu0 %v1027, 64
      %v1047 = vpop.permute.xlu0 %1046
      %v1050 = vmul.f32 %v1041, %v1045
      %v1051 = vmul.f32 %v1043, %v1047
      %1054 = vrot.lane.b32.xlu0 %v1050, 64
      %v1055 = vpop.permute.xlu0 %1054
      %1056 = vrot.lane.b32.xlu0 %v1051, 64
      %v1057 = vpop.permute.xlu0 %1056
      %v1060 = vadd.f32 %v661, %v1055
      %v1061 = vadd.f32 %v662, %v1057
      %v1062 = vtanh.pop %v1060
      %v1063 = vtanh.pop %v1061
      %v1064 = vsub.f32 1.0, %v1041
      %v1065 = vsub.f32 1.0, %v1043
      %1068 = vrot.lane.b32.xlu0 %v1062, 96
      %v1069 = vpop.permute.xlu0 %1068
      %1070 = vrot.lane.b32.xlu0 %v1063, 96
      %v1071 = vpop.permute.xlu0 %1070
      %v1074 = vmul.f32 %v1064, %v1069
      %v1075 = vmul.f32 %v1065, %v1071
      %v1076 = vrot.slane %v936, 7
      %v1077 = vrot.slane %v937, 7
      %v1080 = vmul.f32 %v1041, %v1076
      %v1081 = vmul.f32 %v1043, %v1077
      %v1082 = vadd.f32 %v1074, %v1080
      %v1083 = vadd.f32 %v1075, %v1081
      %1086 = vrot.lane.b32.xlu0 %v1082, 96
      %v1087 = vpop.permute.xlu0 %1086
      %1088 = vrot.lane.b32.xlu0 %v1083, 96
      %v1089 = vpop.permute.xlu0 %1088
      %vm1092 = vcmask 256002
      %1093 = vst.msk [vmem:[#allocation2] sm:$0x4] %vm1092, %v1087
      %1094 = vst.msk [vmem:[#allocation2 + $0x8] sm:$0x4] %vm1092, %v1089
      %v1095 = vrot.slane %v1082, 2
      %v1096 = vrot.slane %v1083, 1
      %v1097 = vsel %vm309, %v1096, %v1095
      %1098 = vrot.lane.b32.xlu0 %v1097, 96
      %v1099 = vpop.permute.xlu0 %1098
      %v1100 = vsel %vm155, %v1099, 0
      %1102 = vmatprep.subr.mxu0 0.0
      %1103 = vmatpush1.msra.mxu0 %v183
      %1104 = vmatprep.subr.mxu0 0.0
      %1105 = vmatpush1.msra.mxu0 %v184
      %1106 = vmatprep.subr.mxu0 0.0
      %1107 = vmatpush1.msra.mxu0 %v185
      %1108 = vmatprep.subr.mxu0 0.0
      %1109 = vmatpush1.msra.mxu0 %v186
      %1110 = vmatprep.subr.mxu0 0.0
      %1111 = vmatpush1.msra.mxu0 0.0
      %1112 = vmatprep.subr.mxu0 0.0
      %1113 = vmatpush1.msra.mxu0 0.0
      %1114 = vmatprep.subr.mxu0 0.0
      %1115 = vmatpush1.msra.mxu0 0.0
      %1116 = vmatprep.subr.mxu0 0.0
      %1117 = vmatpush1.msra.mxu0 0.0
      %1118 = vmatprep.subr.mxu0 0.0
      %1119 = vmatpush1.msra.mxu0 0.0
      %1120 = vmatprep.subr.mxu0 0.0
      %1121 = vmatpush1.msra.mxu0 0.0
      %1122 = vmatprep.subr.mxu0 0.0
      %1123 = vmatpush1.msra.mxu0 0.0
      %1124 = vmatprep.subr.mxu0 0.0
      %1125 = vmatpush1.msra.mxu0 0.0
      %1126 = vmatprep.subr.mxu0 0.0
      %1127 = vmatpush1.msra.mxu0 0.0
      %1128 = vmatprep.subr.mxu0 0.0
      %1129 = vmatpush1.msra.mxu0 0.0
      %1130 = vmatprep.subr.mxu0 0.0
      %1131 = vmatpush1.msra.mxu0 0.0
      %1132 = vmatprep.subr.mxu0 0.0
      %1133 = vmatpush1.msra.mxu0 0.0
      %1134 = vmatprep.subr.mxu0 0.0
      %1135 = vmatpush1.msra.mxu0 0.0
      %1136 = vmatprep.subr.mxu0 0.0
      %1137 = vmatpush1.msra.mxu0 0.0
      %1138 = vmatprep.subr.mxu0 0.0
      %1139 = vmatpush1.msra.mxu0 0.0
      %1140 = vmatprep.subr.mxu0 0.0
      %1141 = vmatpush1.msra.mxu0 0.0
      %1142 = vmatprep.subr.mxu0 0.0
      %1143 = vmatpush1.msra.mxu0 0.0
      %1144 = vmatprep.subr.mxu0 0.0
      %1145 = vmatpush1.msra.mxu0 0.0
      %1146 = vmatprep.subr.mxu0 0.0
      %1147 = vmatpush1.msra.mxu0 0.0
      %1148 = vmatprep.subr.mxu0 0.0
      %1149 = vmatpush1.msra.mxu0 0.0
      %1150 = vmatprep.subr.mxu0 0.0
      %1151 = vmatpush1.msra.mxu0 0.0
      %1152 = vmatprep.subr.mxu0 0.0
      %1153 = vmatpush1.msra.mxu0 0.0
      %1154 = vmatprep.subr.mxu0 0.0
      %1155 = vmatpush1.msra.mxu0 0.0
      %1156 = vmatprep.subr.mxu0 0.0
      %1157 = vmatpush1.msra.mxu0 0.0
      %1158 = vmatprep.subr.mxu0 0.0
      %1159 = vmatpush1.msra.mxu0 0.0
      %1160 = vmatprep.subr.mxu0 0.0
      %1161 = vmatpush1.msra.mxu0 0.0
      %1162 = vmatprep.subr.mxu0 0.0
      %1163 = vmatpush1.msra.mxu0 0.0
      %1164 = vmatprep.subr.mxu0 0.0
      %1165 = vmatpush1.msra.mxu0 0.0
      %1166 = vmatprep.mubr.f32.mxu0 0.0
      %1167 = vmatmul.mubr.f32.gmra.mrb[0].mxu0 %v1100
      %v1168 = vpop.f32.mrb[0].mxu0
      %v1169 = vadd.f32 %v666, %v1168
      %v1170 = vpop.f32.mrb[0].mxu0
      %1171 = vdwg.mxu0
      %v1173 = vrot.slane %v1169, 5
      %v1174 = vrot.slane %v1169, 6
      %v1177 = vadd.f32 %v661, %v1173
      %v1178 = vadd.f32 %v662, %v1174
      %v1179 = vxor.u32 %v1177, 2147483648
      %v1180 = vxor.u32 %v1178, 2147483648
      %v1181 = vmul.f32 %v1179, 1.442695
      %v1182 = vpow.pop %v1181
      %v1183 = vmul.f32 %v1180, 1.442695
      %v1184 = vpow.pop %v1183
      %v1185 = vadd.f32 %v1182, 1.0
      %v1186 = vadd.f32 %v1184, 1.0
      %v1187 = vrcp.pop %v1185
      %v1188 = vmul.f32 1.0, %v1187
      %v1189 = vrcp.pop %v1186
      %v1190 = vmul.f32 1.0, %v1189
      %1191 = vrot.lane.b32.xlu0 %v1173, 64
      %v1192 = vpop.permute.xlu0 %1191
      %1193 = vrot.lane.b32.xlu0 %v1174, 64
      %v1194 = vpop.permute.xlu0 %1193
      %v1197 = vmul.f32 %v1188, %v1192
      %v1198 = vmul.f32 %v1190, %v1194
      %1201 = vrot.lane.b32.xlu0 %v1197, 64
      %v1202 = vpop.permute.xlu0 %1201
      %1203 = vrot.lane.b32.xlu0 %v1198, 64
      %v1204 = vpop.permute.xlu0 %1203
      %v1207 = vadd.f32 %v661, %v1202
      %v1208 = vadd.f32 %v662, %v1204
      %v1209 = vtanh.pop %v1207
      %v1210 = vtanh.pop %v1208
      %v1211 = vsub.f32 1.0, %v1188
      %v1212 = vsub.f32 1.0, %v1190
      %1215 = vrot.lane.b32.xlu0 %v1209, 96
      %v1216 = vpop.permute.xlu0 %1215
      %1217 = vrot.lane.b32.xlu0 %v1210, 96
      %v1218 = vpop.permute.xlu0 %1217
      %v1221 = vmul.f32 %v1211, %v1216
      %v1222 = vmul.f32 %v1212, %v1218
      %v1223 = vrot.slane %v1082, 7
      %v1224 = vrot.slane %v1083, 7
      %v1227 = vmul.f32 %v1188, %v1223
      %v1228 = vmul.f32 %v1190, %v1224
      %v1229 = vadd.f32 %v1221, %v1227
      %v1230 = vadd.f32 %v1222, %v1228
      %1233 = vrot.lane.b32.xlu0 %v1229, 96
      %v1234 = vpop.permute.xlu0 %1233
      %1235 = vrot.lane.b32.xlu0 %v1230, 96
      %v1236 = vpop.permute.xlu0 %1235
      %vm1239 = vcmask 257027
      %1240 = vst.msk [vmem:[#allocation2] sm:$0x8] %vm1239, %v1234
      %1241 = vst.msk [vmem:[#allocation2 + $0x8] sm:$0x8] %vm1239, %v1236
      %v1242 = vrot.slane %v1229, 3
      %v1243 = vrot.slane %v1230, 2
      %v1244 = vsel %vm309, %v1243, %v1242
      %1245 = vrot.lane.b32.xlu0 %v1244, 96
      %v1246 = vpop.permute.xlu0 %1245
      %v1247 = vsel %vm155, %v1246, 0
      %1249 = vmatprep.subr.mxu0 0.0
      %1250 = vmatpush1.msra.mxu0 %v183
      %1251 = vmatprep.subr.mxu0 0.0
      %1252 = vmatpush1.msra.mxu0 %v184
      %1253 = vmatprep.subr.mxu0 0.0
      %1254 = vmatpush1.msra.mxu0 %v185
      %1255 = vmatprep.subr.mxu0 0.0
      %1256 = vmatpush1.msra.mxu0 %v186
      %1257 = vmatprep.subr.mxu0 0.0
      %1258 = vmatpush1.msra.mxu0 0.0
      %1259 = vmatprep.subr.mxu0 0.0
      %1260 = vmatpush1.msra.mxu0 0.0
      %1261 = vmatprep.subr.mxu0 0.0
      %1262 = vmatpush1.msra.mxu0 0.0
      %1263 = vmatprep.subr.mxu0 0.0
      %1264 = vmatpush1.msra.mxu0 0.0
      %1265 = vmatprep.subr.mxu0 0.0
      %1266 = vmatpush1.msra.mxu0 0.0
      %1267 = vmatprep.subr.mxu0 0.0
      %1268 = vmatpush1.msra.mxu0 0.0
      %1269 = vmatprep.subr.mxu0 0.0
      %1270 = vmatpush1.msra.mxu0 0.0
      %1271 = vmatprep.subr.mxu0 0.0
      %1272 = vmatpush1.msra.mxu0 0.0
      %1273 = vmatprep.subr.mxu0 0.0
      %1274 = vmatpush1.msra.mxu0 0.0
      %1275 = vmatprep.subr.mxu0 0.0
      %1276 = vmatpush1.msra.mxu0 0.0
      %1277 = vmatprep.subr.mxu0 0.0
      %1278 = vmatpush1.msra.mxu0 0.0
      %1279 = vmatprep.subr.mxu0 0.0
      %1280 = vmatpush1.msra.mxu0 0.0
      %1281 = vmatprep.subr.mxu0 0.0
      %1282 = vmatpush1.msra.mxu0 0.0
      %1283 = vmatprep.subr.mxu0 0.0
      %1284 = vmatpush1.msra.mxu0 0.0
      %1285 = vmatprep.subr.mxu0 0.0
      %1286 = vmatpush1.msra.mxu0 0.0
      %1287 = vmatprep.subr.mxu0 0.0
      %1288 = vmatpush1.msra.mxu0 0.0
      %1289 = vmatprep.subr.mxu0 0.0
      %1290 = vmatpush1.msra.mxu0 0.0
      %1291 = vmatprep.subr.mxu0 0.0
      %1292 = vmatpush1.msra.mxu0 0.0
      %1293 = vmatprep.subr.mxu0 0.0
      %1294 = vmatpush1.msra.mxu0 0.0
      %1295 = vmatprep.subr.mxu0 0.0
      %1296 = vmatpush1.msra.mxu0 0.0
      %1297 = vmatprep.subr.mxu0 0.0
      %1298 = vmatpush1.msra.mxu0 0.0
      %1299 = vmatprep.subr.mxu0 0.0
      %1300 = vmatpush1.msra.mxu0 0.0
      %1301 = vmatprep.subr.mxu0 0.0
      %1302 = vmatpush1.msra.mxu0 0.0
      %1303 = vmatprep.subr.mxu0 0.0
      %1304 = vmatpush1.msra.mxu0 0.0
      %1305 = vmatprep.subr.mxu0 0.0
      %1306 = vmatpush1.msra.mxu0 0.0
      %1307 = vmatprep.subr.mxu0 0.0
      %1308 = vmatpush1.msra.mxu0 0.0
      %1309 = vmatprep.subr.mxu0 0.0
      %1310 = vmatpush1.msra.mxu0 0.0
      %1311 = vmatprep.subr.mxu0 0.0
      %1312 = vmatpush1.msra.mxu0 0.0
      %1313 = vmatprep.mubr.f32.mxu0 0.0
      %1314 = vmatmul.mubr.f32.gmra.mrb[0].mxu0 %v1247
      %v1315 = vpop.f32.mrb[0].mxu0
      %v1316 = vadd.f32 %v666, %v1315
      %v1317 = vpop.f32.mrb[0].mxu0
      %1318 = vdwg.mxu0
      %v1320 = vrot.slane %v1316, 4
      %v1321 = vrot.slane %v1316, 5
      %v1324 = vadd.f32 %v661, %v1320
      %v1325 = vadd.f32 %v662, %v1321
      %v1326 = vxor.u32 %v1324, 2147483648
      %v1327 = vxor.u32 %v1325, 2147483648
      %v1328 = vmul.f32 %v1326, 1.442695
      %v1329 = vpow.pop %v1328
      %v1330 = vmul.f32 %v1327, 1.442695
      %v1331 = vpow.pop %v1330
      %v1332 = vadd.f32 %v1329, 1.0
      %v1333 = vadd.f32 %v1331, 1.0
      %v1334 = vrcp.pop %v1332
      %v1335 = vmul.f32 1.0, %v1334
      %v1336 = vrcp.pop %v1333
      %v1337 = vmul.f32 1.0, %v1336
      %1338 = vrot.lane.b32.xlu0 %v1320, 64
      %v1339 = vpop.permute.xlu0 %1338
      %1340 = vrot.lane.b32.xlu0 %v1321, 64
      %v1341 = vpop.permute.xlu0 %1340
      %v1344 = vmul.f32 %v1335, %v1339
      %v1345 = vmul.f32 %v1337, %v1341
      %1348 = vrot.lane.b32.xlu0 %v1344, 64
      %v1349 = vpop.permute.xlu0 %1348
      %1350 = vrot.lane.b32.xlu0 %v1345, 64
      %v1351 = vpop.permute.xlu0 %1350
      %v1354 = vadd.f32 %v661, %v1349
      %v1355 = vadd.f32 %v662, %v1351
      %v1356 = vtanh.pop %v1354
      %v1357 = vtanh.pop %v1355
      %v1358 = vsub.f32 1.0, %v1335
      %v1359 = vsub.f32 1.0, %v1337
      %1362 = vrot.lane.b32.xlu0 %v1356, 96
      %v1363 = vpop.permute.xlu0 %1362
      %1364 = vrot.lane.b32.xlu0 %v1357, 96
      %v1365 = vpop.permute.xlu0 %1364
      %v1368 = vmul.f32 %v1358, %v1363
      %v1369 = vmul.f32 %v1359, %v1365
      %v1370 = vrot.slane %v1229, 7
      %v1371 = vrot.slane %v1230, 7
      %v1374 = vmul.f32 %v1335, %v1370
      %v1375 = vmul.f32 %v1337, %v1371
      %v1376 = vadd.f32 %v1368, %v1374
      %v1377 = vadd.f32 %v1369, %v1375
      %1380 = vrot.lane.b32.xlu0 %v1376, 96
      %v1381 = vpop.permute.xlu0 %1380
      %1382 = vrot.lane.b32.xlu0 %v1377, 96
      %v1383 = vpop.permute.xlu0 %1382
      %vm1386 = vcmask 258052
      %1387 = vst.msk [vmem:[#allocation2] sm:$0x10] %vm1386, %v1381
      %1388 = vst.msk [vmem:[#allocation2 + $0x8] sm:$0x10] %vm1386, %v1383
      %v1389 = vrot.slane %v1376, 4
      %v1390 = vrot.slane %v1377, 3
      %v1391 = vsel %vm309, %v1390, %v1389
      %1392 = vrot.lane.b32.xlu0 %v1391, 96
      %v1393 = vpop.permute.xlu0 %1392
      %v1394 = vsel %vm155, %v1393, 0
      %1396 = vmatprep.subr.mxu0 0.0
      %1397 = vmatpush1.msra.mxu0 %v183
      %1398 = vmatprep.subr.mxu0 0.0
      %1399 = vmatpush1.msra.mxu0 %v184
      %1400 = vmatprep.subr.mxu0 0.0
      %1401 = vmatpush1.msra.mxu0 %v185
      %1402 = vmatprep.subr.mxu0 0.0
      %1403 = vmatpush1.msra.mxu0 %v186
      %1404 = vmatprep.subr.mxu0 0.0
      %1405 = vmatpush1.msra.mxu0 0.0
      %1406 = vmatprep.subr.mxu0 0.0
      %1407 = vmatpush1.msra.mxu0 0.0
      %1408 = vmatprep.subr.mxu0 0.0
      %1409 = vmatpush1.msra.mxu0 0.0
      %1410 = vmatprep.subr.mxu0 0.0
      %1411 = vmatpush1.msra.mxu0 0.0
      %1412 = vmatprep.subr.mxu0 0.0
      %1413 = vmatpush1.msra.mxu0 0.0
      %1414 = vmatprep.subr.mxu0 0.0
      %1415 = vmatpush1.msra.mxu0 0.0
      %1416 = vmatprep.subr.mxu0 0.0
      %1417 = vmatpush1.msra.mxu0 0.0
      %1418 = vmatprep.subr.mxu0 0.0
      %1419 = vmatpush1.msra.mxu0 0.0
      %1420 = vmatprep.subr.mxu0 0.0
      %1421 = vmatpush1.msra.mxu0 0.0
      %1422 = vmatprep.subr.mxu0 0.0
      %1423 = vmatpush1.msra.mxu0 0.0
      %1424 = vmatprep.subr.mxu0 0.0
      %1425 = vmatpush1.msra.mxu0 0.0
      %1426 = vmatprep.subr.mxu0 0.0
      %1427 = vmatpush1.msra.mxu0 0.0
      %1428 = vmatprep.subr.mxu0 0.0
      %1429 = vmatpush1.msra.mxu0 0.0
      %1430 = vmatprep.subr.mxu0 0.0
      %1431 = vmatpush1.msra.mxu0 0.0
      %1432 = vmatprep.subr.mxu0 0.0
      %1433 = vmatpush1.msra.mxu0 0.0
      %1434 = vmatprep.subr.mxu0 0.0
      %1435 = vmatpush1.msra.mxu0 0.0
      %1436 = vmatprep.subr.mxu0 0.0
      %1437 = vmatpush1.msra.mxu0 0.0
      %1438 = vmatprep.subr.mxu0 0.0
      %1439 = vmatpush1.msra.mxu0 0.0
      %1440 = vmatprep.subr.mxu0 0.0
      %1441 = vmatpush1.msra.mxu0 0.0
      %1442 = vmatprep.subr.mxu0 0.0
      %1443 = vmatpush1.msra.mxu0 0.0
      %1444 = vmatprep.subr.mxu0 0.0
      %1445 = vmatpush1.msra.mxu0 0.0
      %1446 = vmatprep.subr.mxu0 0.0
      %1447 = vmatpush1.msra.mxu0 0.0
      %1448 = vmatprep.subr.mxu0 0.0
      %1449 = vmatpush1.msra.mxu0 0.0
      %1450 = vmatprep.subr.mxu0 0.0
      %1451 = vmatpush1.msra.mxu0 0.0
      %1452 = vmatprep.subr.mxu0 0.0
      %1453 = vmatpush1.msra.mxu0 0.0
      %1454 = vmatprep.subr.mxu0 0.0
      %1455 = vmatpush1.msra.mxu0 0.0
      %1456 = vmatprep.subr.mxu0 0.0
      %1457 = vmatpush1.msra.mxu0 0.0
      %1458 = vmatprep.subr.mxu0 0.0
      %1459 = vmatpush1.msra.mxu0 0.0
      %1460 = vmatprep.mubr.f32.mxu0 0.0
      %1461 = vmatmul.mubr.f32.gmra.mrb[0].mxu0 %v1394
      %v1462 = vpop.f32.mrb[0].mxu0
      %v1463 = vadd.f32 %v666, %v1462
      %v1464 = vpop.f32.mrb[0].mxu0
      %1465 = vdwg.mxu0
      %v1467 = vrot.slane %v1463, 3
      %v1468 = vrot.slane %v1463, 4
      %v1471 = vadd.f32 %v661, %v1467
      %v1472 = vadd.f32 %v662, %v1468
      %v1473 = vxor.u32 %v1471, 2147483648
      %v1474 = vxor.u32 %v1472, 2147483648
      %v1475 = vmul.f32 %v1473, 1.442695
      %v1476 = vpow.pop %v1475
      %v1477 = vmul.f32 %v1474, 1.442695
      %v1478 = vpow.pop %v1477
      %v1479 = vadd.f32 %v1476, 1.0
      %v1480 = vadd.f32 %v1478, 1.0
      %v1481 = vrcp.pop %v1479
      %v1482 = vmul.f32 1.0, %v1481
      %v1483 = vrcp.pop %v1480
      %v1484 = vmul.f32 1.0, %v1483
      %1485 = vrot.lane.b32.xlu0 %v1467, 64
      %v1486 = vpop.permute.xlu0 %1485
      %1487 = vrot.lane.b32.xlu0 %v1468, 64
      %v1488 = vpop.permute.xlu0 %1487
      %v1491 = vmul.f32 %v1482, %v1486
      %v1492 = vmul.f32 %v1484, %v1488
      %1495 = vrot.lane.b32.xlu0 %v1491, 64
      %v1496 = vpop.permute.xlu0 %1495
      %1497 = vrot.lane.b32.xlu0 %v1492, 64
      %v1498 = vpop.permute.xlu0 %1497
      %v1501 = vadd.f32 %v661, %v1496
      %v1502 = vadd.f32 %v662, %v1498
      %v1503 = vtanh.pop %v1501
      %v1504 = vtanh.pop %v1502
      %v1505 = vsub.f32 1.0, %v1482
      %v1506 = vsub.f32 1.0, %v1484
      %1509 = vrot.lane.b32.xlu0 %v1503, 96
      %v1510 = vpop.permute.xlu0 %1509
      %1511 = vrot.lane.b32.xlu0 %v1504, 96
      %v1512 = vpop.permute.xlu0 %1511
      %v1515 = vmul.f32 %v1505, %v1510
      %v1516 = vmul.f32 %v1506, %v1512
      %v1517 = vrot.slane %v1376, 7
      %v1518 = vrot.slane %v1377, 7
      %v1521 = vmul.f32 %v1482, %v1517
      %v1522 = vmul.f32 %v1484, %v1518
      %v1523 = vadd.f32 %v1515, %v1521
      %v1524 = vadd.f32 %v1516, %v1522
      %1527 = vrot.lane.b32.xlu0 %v1523, 96
      %v1528 = vpop.permute.xlu0 %1527
      %1529 = vrot.lane.b32.xlu0 %v1524, 96
      %v1530 = vpop.permute.xlu0 %1529
      %vm1533 = vcmask 259077
      %1534 = vst.msk [vmem:[#allocation2] sm:$0x20] %vm1533, %v1528
      %1535 = vst.msk [vmem:[#allocation2 + $0x8] sm:$0x20] %vm1533, %v1530
      %v1536 = vrot.slane %v1523, 5
      %v1537 = vrot.slane %v1524, 4
      %v1538 = vsel %vm309, %v1537, %v1536
      %1539 = vrot.lane.b32.xlu0 %v1538, 96
      %v1540 = vpop.permute.xlu0 %1539
      %v1541 = vsel %vm155, %v1540, 0
      %1543 = vmatprep.subr.mxu0 0.0
      %1544 = vmatpush1.msra.mxu0 %v183
      %1545 = vmatprep.subr.mxu0 0.0
      %1546 = vmatpush1.msra.mxu0 %v184
      %1547 = vmatprep.subr.mxu0 0.0
      %1548 = vmatpush1.msra.mxu0 %v185
      %1549 = vmatprep.subr.mxu0 0.0
      %1550 = vmatpush1.msra.mxu0 %v186
      %1551 = vmatprep.subr.mxu0 0.0
      %1552 = vmatpush1.msra.mxu0 0.0
      %1553 = vmatprep.subr.mxu0 0.0
      %1554 = vmatpush1.msra.mxu0 0.0
      %1555 = vmatprep.subr.mxu0 0.0
      %1556 = vmatpush1.msra.mxu0 0.0
      %1557 = vmatprep.subr.mxu0 0.0
      %1558 = vmatpush1.msra.mxu0 0.0
      %1559 = vmatprep.subr.mxu0 0.0
      %1560 = vmatpush1.msra.mxu0 0.0
      %1561 = vmatprep.subr.mxu0 0.0
      %1562 = vmatpush1.msra.mxu0 0.0
      %1563 = vmatprep.subr.mxu0 0.0
      %1564 = vmatpush1.msra.mxu0 0.0
      %1565 = vmatprep.subr.mxu0 0.0
      %1566 = vmatpush1.msra.mxu0 0.0
      %1567 = vmatprep.subr.mxu0 0.0
      %1568 = vmatpush1.msra.mxu0 0.0
      %1569 = vmatprep.subr.mxu0 0.0
      %1570 = vmatpush1.msra.mxu0 0.0
      %1571 = vmatprep.subr.mxu0 0.0
      %1572 = vmatpush1.msra.mxu0 0.0
      %1573 = vmatprep.subr.mxu0 0.0
      %1574 = vmatpush1.msra.mxu0 0.0
      %1575 = vmatprep.subr.mxu0 0.0
      %1576 = vmatpush1.msra.mxu0 0.0
      %1577 = vmatprep.subr.mxu0 0.0
      %1578 = vmatpush1.msra.mxu0 0.0
      %1579 = vmatprep.subr.mxu0 0.0
      %1580 = vmatpush1.msra.mxu0 0.0
      %1581 = vmatprep.subr.mxu0 0.0
      %1582 = vmatpush1.msra.mxu0 0.0
      %1583 = vmatprep.subr.mxu0 0.0
      %1584 = vmatpush1.msra.mxu0 0.0
      %1585 = vmatprep.subr.mxu0 0.0
      %1586 = vmatpush1.msra.mxu0 0.0
      %1587 = vmatprep.subr.mxu0 0.0
      %1588 = vmatpush1.msra.mxu0 0.0
      %1589 = vmatprep.subr.mxu0 0.0
      %1590 = vmatpush1.msra.mxu0 0.0
      %1591 = vmatprep.subr.mxu0 0.0
      %1592 = vmatpush1.msra.mxu0 0.0
      %1593 = vmatprep.subr.mxu0 0.0
      %1594 = vmatpush1.msra.mxu0 0.0
      %1595 = vmatprep.subr.mxu0 0.0
      %1596 = vmatpush1.msra.mxu0 0.0
      %1597 = vmatprep.subr.mxu0 0.0
      %1598 = vmatpush1.msra.mxu0 0.0
      %1599 = vmatprep.subr.mxu0 0.0
      %1600 = vmatpush1.msra.mxu0 0.0
      %1601 = vmatprep.subr.mxu0 0.0
      %1602 = vmatpush1.msra.mxu0 0.0
      %1603 = vmatprep.subr.mxu0 0.0
      %1604 = vmatpush1.msra.mxu0 0.0
      %1605 = vmatprep.subr.mxu0 0.0
      %1606 = vmatpush1.msra.mxu0 0.0
      %1607 = vmatprep.mubr.f32.mxu0 0.0
      %1608 = vmatmul.mubr.f32.gmra.mrb[0].mxu0 %v1541
      %v1609 = vpop.f32.mrb[0].mxu0
      %v1610 = vadd.f32 %v666, %v1609
      %v1611 = vpop.f32.mrb[0].mxu0
      %1612 = vdwg.mxu0
      %v1614 = vrot.slane %v1610, 2
      %v1615 = vrot.slane %v1610, 3
      %v1618 = vadd.f32 %v661, %v1614
      %v1619 = vadd.f32 %v662, %v1615
      %v1620 = vxor.u32 %v1618, 2147483648
      %v1621 = vxor.u32 %v1619, 2147483648
      %v1622 = vmul.f32 %v1620, 1.442695
      %v1623 = vpow.pop %v1622
      %v1624 = vmul.f32 %v1621, 1.442695
      %v1625 = vpow.pop %v1624
      %v1626 = vadd.f32 %v1623, 1.0
      %v1627 = vadd.f32 %v1625, 1.0
      %v1628 = vrcp.pop %v1626
      %v1629 = vmul.f32 1.0, %v1628
      %v1630 = vrcp.pop %v1627
      %v1631 = vmul.f32 1.0, %v1630
      %1632 = vrot.lane.b32.xlu0 %v1614, 64
      %v1633 = vpop.permute.xlu0 %1632
      %1634 = vrot.lane.b32.xlu0 %v1615, 64
      %v1635 = vpop.permute.xlu0 %1634
      %v1638 = vmul.f32 %v1629, %v1633
      %v1639 = vmul.f32 %v1631, %v1635
      %1642 = vrot.lane.b32.xlu0 %v1638, 64
      %v1643 = vpop.permute.xlu0 %1642
      %1644 = vrot.lane.b32.xlu0 %v1639, 64
      %v1645 = vpop.permute.xlu0 %1644
      %v1648 = vadd.f32 %v661, %v1643
      %v1649 = vadd.f32 %v662, %v1645
      %v1650 = vtanh.pop %v1648
      %v1651 = vtanh.pop %v1649
      %v1652 = vsub.f32 1.0, %v1629
      %v1653 = vsub.f32 1.0, %v1631
      %1656 = vrot.lane.b32.xlu0 %v1650, 96
      %v1657 = vpop.permute.xlu0 %1656
      %1658 = vrot.lane.b32.xlu0 %v1651, 96
      %v1659 = vpop.permute.xlu0 %1658
      %v1662 = vmul.f32 %v1652, %v1657
      %v1663 = vmul.f32 %v1653, %v1659
      %v1664 = vrot.slane %v1523, 7
      %v1665 = vrot.slane %v1524, 7
      %v1668 = vmul.f32 %v1629, %v1664
      %v1669 = vmul.f32 %v1631, %v1665
      %v1670 = vadd.f32 %v1662, %v1668
      %v1671 = vadd.f32 %v1663, %v1669
      %1674 = vrot.lane.b32.xlu0 %v1670, 96
      %v1675 = vpop.permute.xlu0 %1674
      %1676 = vrot.lane.b32.xlu0 %v1671, 96
      %v1677 = vpop.permute.xlu0 %1676
      %vm1680 = vcmask 260102
      %1681 = vst.msk [vmem:[#allocation2] sm:$0x40] %vm1680, %v1675
      %1682 = vst.msk [vmem:[#allocation2 + $0x8] sm:$0x40] %vm1680, %v1677
      %v1683 = vrot.slane %v1670, 6
      %v1684 = vrot.slane %v1671, 5
      %v1685 = vsel %vm309, %v1684, %v1683
      %1686 = vrot.lane.b32.xlu0 %v1685, 96
      %v1687 = vpop.permute.xlu0 %1686
      %v1688 = vsel %vm155, %v1687, 0
      %1690 = vmatprep.subr.mxu0 0.0
      %1691 = vmatpush1.msra.mxu0 %v183
      %1692 = vmatprep.subr.mxu0 0.0
      %1693 = vmatpush1.msra.mxu0 %v184
      %1694 = vmatprep.subr.mxu0 0.0
      %1695 = vmatpush1.msra.mxu0 %v185
      %1696 = vmatprep.subr.mxu0 0.0
      %1697 = vmatpush1.msra.mxu0 %v186
      %1698 = vmatprep.subr.mxu0 0.0
      %1699 = vmatpush1.msra.mxu0 0.0
      %1700 = vmatprep.subr.mxu0 0.0
      %1701 = vmatpush1.msra.mxu0 0.0
      %1702 = vmatprep.subr.mxu0 0.0
      %1703 = vmatpush1.msra.mxu0 0.0
      %1704 = vmatprep.subr.mxu0 0.0
      %1705 = vmatpush1.msra.mxu0 0.0
      %1706 = vmatprep.subr.mxu0 0.0
      %1707 = vmatpush1.msra.mxu0 0.0
      %1708 = vmatprep.subr.mxu0 0.0
      %1709 = vmatpush1.msra.mxu0 0.0
      %1710 = vmatprep.subr.mxu0 0.0
      %1711 = vmatpush1.msra.mxu0 0.0
      %1712 = vmatprep.subr.mxu0 0.0
      %1713 = vmatpush1.msra.mxu0 0.0
      %1714 = vmatprep.subr.mxu0 0.0
      %1715 = vmatpush1.msra.mxu0 0.0
      %1716 = vmatprep.subr.mxu0 0.0
      %1717 = vmatpush1.msra.mxu0 0.0
      %1718 = vmatprep.subr.mxu0 0.0
      %1719 = vmatpush1.msra.mxu0 0.0
      %1720 = vmatprep.subr.mxu0 0.0
      %1721 = vmatpush1.msra.mxu0 0.0
      %1722 = vmatprep.subr.mxu0 0.0
      %1723 = vmatpush1.msra.mxu0 0.0
      %1724 = vmatprep.subr.mxu0 0.0
      %1725 = vmatpush1.msra.mxu0 0.0
      %1726 = vmatprep.subr.mxu0 0.0
      %1727 = vmatpush1.msra.mxu0 0.0
      %1728 = vmatprep.subr.mxu0 0.0
      %1729 = vmatpush1.msra.mxu0 0.0
      %1730 = vmatprep.subr.mxu0 0.0
      %1731 = vmatpush1.msra.mxu0 0.0
      %1732 = vmatprep.subr.mxu0 0.0
      %1733 = vmatpush1.msra.mxu0 0.0
      %1734 = vmatprep.subr.mxu0 0.0
      %1735 = vmatpush1.msra.mxu0 0.0
      %1736 = vmatprep.subr.mxu0 0.0
      %1737 = vmatpush1.msra.mxu0 0.0
      %1738 = vmatprep.subr.mxu0 0.0
      %1739 = vmatpush1.msra.mxu0 0.0
      %1740 = vmatprep.subr.mxu0 0.0
      %1741 = vmatpush1.msra.mxu0 0.0
      %1742 = vmatprep.subr.mxu0 0.0
      %1743 = vmatpush1.msra.mxu0 0.0
      %1744 = vmatprep.subr.mxu0 0.0
      %1745 = vmatpush1.msra.mxu0 0.0
      %1746 = vmatprep.subr.mxu0 0.0
      %1747 = vmatpush1.msra.mxu0 0.0
      %1748 = vmatprep.subr.mxu0 0.0
      %1749 = vmatpush1.msra.mxu0 0.0
      %1750 = vmatprep.subr.mxu0 0.0
      %1751 = vmatpush1.msra.mxu0 0.0
      %1752 = vmatprep.subr.mxu0 0.0
      %1753 = vmatpush1.msra.mxu0 0.0
      %1754 = vmatprep.mubr.f32.mxu0 0.0
      %1755 = vmatmul.mubr.f32.gmra.mrb[0].mxu0 %v1688
      %v1756 = vpop.f32.mrb[0].mxu0
      %v1757 = vadd.f32 %v666, %v1756
      %v1758 = vpop.f32.mrb[0].mxu0
      %1759 = vdwg.mxu0
      %v1761 = vrot.slane %v1757, 1
      %v1762 = vrot.slane %v1757, 2
      %v1765 = vadd.f32 %v661, %v1761
      %v1766 = vadd.f32 %v662, %v1762
      %v1767 = vxor.u32 %v1765, 2147483648
      %v1768 = vxor.u32 %v1766, 2147483648
      %v1769 = vmul.f32 %v1767, 1.442695
      %v1770 = vpow.pop %v1769
      %v1771 = vmul.f32 %v1768, 1.442695
      %v1772 = vpow.pop %v1771
      %v1773 = vadd.f32 %v1770, 1.0
      %v1774 = vadd.f32 %v1772, 1.0
      %v1775 = vrcp.pop %v1773
      %v1776 = vmul.f32 1.0, %v1775
      %v1777 = vrcp.pop %v1774
      %v1778 = vmul.f32 1.0, %v1777
      %1779 = vrot.lane.b32.xlu0 %v1761, 64
      %v1780 = vpop.permute.xlu0 %1779
      %1781 = vrot.lane.b32.xlu0 %v1762, 64
      %v1782 = vpop.permute.xlu0 %1781
      %v1785 = vmul.f32 %v1776, %v1780
      %v1786 = vmul.f32 %v1778, %v1782
      %1789 = vrot.lane.b32.xlu0 %v1785, 64
      %v1790 = vpop.permute.xlu0 %1789
      %1791 = vrot.lane.b32.xlu0 %v1786, 64
      %v1792 = vpop.permute.xlu0 %1791
      %v1795 = vadd.f32 %v661, %v1790
      %v1796 = vadd.f32 %v662, %v1792
      %v1797 = vtanh.pop %v1795
      %v1798 = vtanh.pop %v1796
      %v1799 = vsub.f32 1.0, %v1776
      %v1800 = vsub.f32 1.0, %v1778
      %1803 = vrot.lane.b32.xlu0 %v1797, 96
      %v1804 = vpop.permute.xlu0 %1803
      %1805 = vrot.lane.b32.xlu0 %v1798, 96
      %v1806 = vpop.permute.xlu0 %1805
      %v1809 = vmul.f32 %v1799, %v1804
      %v1810 = vmul.f32 %v1800, %v1806
      %v1811 = vrot.slane %v1670, 7
      %v1812 = vrot.slane %v1671, 7
      %v1815 = vmul.f32 %v1776, %v1811
      %v1816 = vmul.f32 %v1778, %v1812
      %v1817 = vadd.f32 %v1809, %v1815
      %v1818 = vadd.f32 %v1810, %v1816
      %1821 = vrot.lane.b32.xlu0 %v1817, 96
      %v1822 = vpop.permute.xlu0 %1821
      %1823 = vrot.lane.b32.xlu0 %v1818, 96
      %v1824 = vpop.permute.xlu0 %1823
      %vm1827 = vcmask 261127
      %1828 = vst.msk [vmem:[#allocation2] sm:$0x80] %vm1827, %v1822
      %1829 = vst.msk [vmem:[#allocation2 + $0x8] sm:$0x80] %vm1827, %v1824
      %v1830 = vld [vmem:[#allocation2] sm:$0xff]
      %v1831 = vld [vmem:[#allocation2 + $0x8] sm:$0xff]
      %v1833 = vlaneseq
      %v1834 = vshrl.u32 %v1833, 7
      %v1835 = vsub.s32 0, %v1834
      %v1836 = vrot.slane %v189, %v1835
      %v1838 = vmul.f32 %v1830, %v1836
      %v1839 = vmul.f32 %v1831, %v1836
      %v1840 = vsel %vm155, %v1838, 0.0
      %1841 = vadd.xlane.f32.xlu0 %v1840
      %v1842 = vpop.xlane.xlu0 %1841
      %v1843 = vsel %vm155, %v1839, 0.0
      %1844 = vadd.xlane.f32.xlu0 %v1843
      %v1845 = vpop.xlane.xlu0 %1844
      %v1847 = vlaneseq
      %v1848 = vshrl.u32 %v1847, 7
      %v1849 = vsub.s32 0, %v1848
      %v1850 = vrot.slane %v190, %v1849
      %1852 = vbcast.lane.b32.xlu0 %v1850, 256
      %v1853 = vpop.permute.xlu0 %1852
      %v1855 = vadd.f32 %v1842, %v1853
      %v1856 = vadd.f32 %v1845, %v1853
      %v1857 = vxor.u32 %v1855, 2147483648
      %v1858 = vxor.u32 %v1856, 2147483648
      %v1859 = vmul.f32 %v1857, 1.442695
      %v1860 = vpow.pop %v1859
      %v1861 = vmul.f32 %v1858, 1.442695
      %v1862 = vpow.pop %v1861
      %v1863 = vadd.f32 %v1860, 1.0
      %v1864 = vadd.f32 %v1862, 1.0
      %v1865 = vrcp.pop %v1863
      %v1866 = vmul.f32 1.0, %v1865
      %v1867 = vrcp.pop %v1864
      %v1868 = vmul.f32 1.0, %v1867
      %s1869 = sadd.s32 %s192, 1
      %s1870 = smul.u32 %s1869, 8
      %s1871 = scalar_lea.vmem [#allocation17], %s1870
      %1872 = vst.msk [vmem:[%s1871] sm:$0xff] %vm155, %v1830
      %1874 = vset.pattern.permute.xlu0 0
      %1875 = vperm.xlu0 %1874, %v1866
      %v1876 = vpop.permute.xlu0 %1875
      %v1877 = vlaneseq
      %v1878 = vand.u32 %v1877, 127
      %v1879 = vlaneseq
      %v1880 = vshrl.u32 %v1879, 7
      %v1881 = vsub.s32 %v1878, %v1880
      %v1882 = vrot.slane %v1876, %v1881
      %s1884 = scalar_lea.vmem %s13, %s192
      %vm1885 = vcmask 57344
      %1886 = vst.msk [vmem:[%s1884] sm:$0x1] %vm1885, %v1882
      %s1887 = sadd.s32 %s192, 10
      %s1888 = smul.u32 %s1887, 8
      %s1889 = scalar_lea.vmem [#allocation17], %s1888
      %1890 = vst.msk [vmem:[%s1889] sm:$0xff] %vm155, %v1831
      %s1891 = sadd.s32 %s192, 8
      %1893 = vset.pattern.permute.xlu0 0
      %1894 = vperm.xlu0 %1893, %v1868
      %v1895 = vpop.permute.xlu0 %1894
      %v1896 = vlaneseq
      %v1897 = vshrl.u32 %v1896, 7
      %v1898 = vsub.s32 %v1878, %v1897
      %v1899 = vrot.slane %v1895, %v1898
      %s1901 = scalar_lea.vmem %s13, %s1891
      %1902 = vst.msk [vmem:[%s1901] sm:$0x1] %vm1885, %v1899
    $region90: #{tpu_custom_call.1} parent=1 // loop_footer
      %s196 = sadd.s32 1, %s192
    $region91: #{tpu_custom_call.1} parent=1 // loop_footer_branch
      %191 = sbr.rel target = $region87
    $region92: #{tpu_custom_call.1} parent=1 // loop_exit
      _
    // Predicated region
    $region93: #{tpu_custom_call.1} parent=1 // pred_check
      _
    $region94: #{tpu_custom_call.1} parent=1 // pred_check_branch
      %1904 = sbr.rel (0) target = $region96
    $region95: #{tpu_custom_call.1} parent=1 // pred_region
      _
    $region96: #{tpu_custom_call.1} parent=1 // pred_fallthru
      _
    // Predicated region
    $region97: #{tpu_custom_call.1} parent=1 // pred_check
      _
    $region98: #{tpu_custom_call.1} parent=1 // pred_check_branch
      %1906 = sbr.rel (0) target = $region100
    $region99: #{tpu_custom_call.1} parent=1 // pred_region
      %s1908 = ssub.s32 2304, 2304
      %1909 = vsyncadd [#allocation5], %s1908
      %s1910 = sshll.u32 [#allocation17], 4
      %s1911 = int_to_ptr.vmem [resolvable:$true] %s1910
      %1916 = dma.vmem_to_hbm [thread:$0]  %s1911, 2304, %s14, [#allocation5], 128, 128, 8
    $region100: #{tpu_custom_call.1} parent=1 // pred_fallthru
      _
    // Predicated region
    $region101: #{tpu_custom_call.1} parent=1 // pred_check
      _
    $region102: #{tpu_custom_call.1} parent=1 // pred_check_branch
      %1918 = sbr.rel (0) target = $region104
    $region103: #{tpu_custom_call.1} parent=1 // pred_region
      _
    $region104: #{tpu_custom_call.1} parent=1 // pred_fallthru
      _
    // Predicated region
    $region105: #{tpu_custom_call.1} parent=1 // pred_check
      _
    $region106: #{tpu_custom_call.1} parent=1 // pred_check_branch
      %1920 = sbr.rel (0) target = $region108
    $region107: #{tpu_custom_call.1} parent=1 // pred_region
      %1921 = dma.done [#allocation5], 2304
    $region108: #{tpu_custom_call.1} parent=1 // pred_fallthru
      _
    %1922 = vsyncpa [#allocation4], 1
    %1923 = vsyncpa [#allocation7], 1
    %1924 = vsyncpa [#allocation10], 1
    %1925 = vsyncpa [#allocation13], 1
    %1926 = vsyncpa [#allocation16], 1
    %1927 = vsyncpa [#allocation5], 1

</llo_original>
